<compile_context>
chip_gen: v7x
topology: tpu7x:2x2x1
jax: 0.10.0
libtpu: 0.0.40
codegen_flags: <defaults>
</compile_context>

<pallas_src>
import numpy as np

import jax
import jax.numpy as jnp
from jax.experimental import pallas as pl
from jax.experimental.pallas import tpu as pltpu

# ----------------------------- configuration --------------------------------
HIDDEN = 32          # hidden_channels
NUM_RADIAL = 6       # num_radial
BOND_CHANNELS = 16   # bond_channels
HEADS = 2            # head
NUM_NODES = 12
NUM_GRAPHS = 2


# ------------------------------ fused kernel ---------------------------------
def _graph_rbf_kernel(emb_ref, rbf_ref, src_ref, dst_ref, i_ref, j_ref,
                      wgat_ref, asrc_ref, adst_ref, gbias_ref,
                      wlg_ref, blg_ref, wrbf_ref, brbf_ref,
                      wij_ref, wro_ref, bout_ref,
                      bond_out_ref, x_out_ref):
    f32, bf16 = jnp.float32, jnp.bfloat16
    emb = emb_ref[...]                       # (N, H) f32
    N, H = emb.shape
    HH = wgat_ref.shape[1]                   # heads * H
    heads = HH // H
    Esl = src_ref.shape[0]                   # padded bond edges (incl. self loops)
    Ep = i_ref.shape[0]                      # padded rbf edges
    B = bout_ref.shape[1]

    def swish(y):                            # y * sigmoid(y); reciprocal -> EUP
        return y * pl.reciprocal(1.0 + jnp.exp(-y), approx=True)

    def bdot(a, b):                          # bf16-in / f32-accumulate MXU dot
        return jnp.dot(a.astype(bf16), b.astype(bf16), preferred_element_type=f32)

    def bdot_ta(a, b):                       # a^T @ b  (contract axis 0 of both)
        return jax.lax.dot_general(a.astype(bf16), b.astype(bf16),
                                   (((0,), (0,)), ((), ())),
                                   preferred_element_type=f32)

    def bdot_tb(a, b):                       # a @ b^T  (contract last axes)
        return jax.lax.dot_general(a.astype(bf16), b.astype(bf16),
                                   (((1,), (1,)), ((), ())),
                                   preferred_element_type=f32)

    def onehot_bf16(cond):                   # bool -> bf16 mask (exact 0/1)
        return cond.astype(f32).astype(bf16)

    # ---------------- GATConv (both heads stacked along lanes) ----------------
    # bf16 one-hot masks rebuilt in-kernel from the int32 index columns.  Padded
    # bond edges carry dst == N, so their gath_dst row is all-zero and they drop
    # out of the softmax / aggregation automatically.
    iota_bn = jax.lax.broadcasted_iota(jnp.int32, (Esl, N), 1)
    dst_hit = iota_bn == dst_ref[...]                      # (Esl, N) bool
    gath_src = onehot_bf16(iota_bn == src_ref[...])        # (Esl, N)
    gath_dst = onehot_bf16(dst_hit)                        # (Esl, N); reused transposed

    xh = bdot(emb, wgat_ref[...])                          # (N, heads*H) one dot
    xh_src = bdot(gath_src, xh)                            # (Esl, heads*H) ONE src gather
    a_src = bdot(xh_src, asrc_ref[...])                    # (Esl, heads) from gathered feats
    a_dst_n = bdot(xh, adst_ref[...])                      # (N, heads)
    a_dst = bdot(gath_dst, a_dst_n)                        # (Esl, heads) ONE dst gather
    e = a_src + a_dst
    e = jnp.where(e > 0.0, e, 0.2 * e)                     # LeakyReLU(0.2)

    # per-destination max (robust segment softmax; shift cancels exactly)
    NEG = jnp.float32(-1e30)
    seg_max = jnp.concatenate(
        [jnp.max(jnp.where(dst_hit, e[:, h:h + 1], NEG), axis=0, keepdims=True)
         for h in range(heads)], axis=0)                   # (heads, N)
    shift = bdot_tb(gath_dst, seg_max)                     # (Esl, heads) = seg_max[dst]
    ee = jnp.exp(e - shift)                                # (Esl, heads)

    # unnormalized messages + softmax denominators: ONE fused transposed scatter
    payload = jnp.concatenate(
        [xh_src[:, h * H:(h + 1) * H] * ee[:, h:h + 1] for h in range(heads)]
        + [ee], axis=-1)                                   # (Esl, heads*H + heads)
    agg = bdot_ta(gath_dst, payload)                       # (N, heads*H + heads)

    # per-(node, head) normalize + GAT bias + residual + InstanceNorm: cheap
    # node-level VPU work; 1/den stays in f32 (no bf16 on attention weights).
    gbias = gbias_ref[...]
    xn_parts = []
    for h in range(heads):
        den = agg[:, HH + h:HH + h + 1] + 1e-16
        gat = agg[:, h * H:(h + 1) * H] / den + gbias[:, h * H:(h + 1) * H]
        xg = gat + emb
        mu = jnp.mean(xg, axis=-1, keepdims=True)
        d = xg - mu
        var = jnp.mean(d * d, axis=-1, keepdims=True)
        xn_parts.append(d * jax.lax.rsqrt(var + 1e-5))
    xn = jnp.concatenate(xn_parts, axis=-1)                # (N, heads*H)
    x_new = swish(bdot(xn, wlg_ref[...]) + blg_ref[...])   # lin_GAT as ONE dot
    x_out_ref[...] = x_new

    # ---------------- lin_rbf + x[i]/x[j] gather + lin_output -----------------
    # the i/j mask is built only now so the GAT masks are no longer live.
    iota_ij = jax.lax.broadcasted_iota(jnp.int32, (Ep, 2 * N), 1)
    gath_ij = onehot_bf16(jnp.logical_or(iota_ij == i_ref[...],
                                         iota_ij == j_ref[...] + N))    # (Ep, 2N)

    rbf_h = swish(bdot(rbf_ref[...], wrbf_ref[...]) + brbf_ref[...])    # (Ep, H)
    p = bdot(x_new, wij_ref[...])                          # (N, 2B): [x@W_i | x@W_j]
    p_stack = jnp.concatenate([p[:, :B], p[:, B:]], axis=0)             # (2N, B)
    y = bdot(gath_ij, p_stack) + bdot(rbf_h, wro_ref[...]) + bout_ref[...]
    bond_out_ref[...] = swish(y)                           # (Ep, B)


# -------------------------------- wrapper ------------------------------------
def graph_rbf_block(params, emb, rbf, edge_index, i_idx, j_idx):
    """GraphRbfBlock.forward -> (bond_x (E, bond_channels), x (N, hidden))."""
    f32, bf16 = jnp.float32, jnp.bfloat16
    N, H = emb.shape
    heads = int(params['att_src'].shape[0])
    HH = heads * H
    R = int(rbf.shape[1])
    B = int(params['bout'].shape[0])
    E = int(i_idx.shape[0])

    # GATConv(add_self_loops=True): one self-loop per node; pad the edge list to
    # a sublane multiple using dst == N (out of range -> all-zero one-hot row).
    loops = jnp.arange(N, dtype=jnp.int32)
    bsrc = jnp.concatenate([edge_index[0].astype(jnp.int32), loops])
    bdst = jnp.concatenate([edge_index[1].astype(jnp.int32), loops])
    Esl = int(bsrc.shape[0])
    Esl_p = -(-Esl // 8) * 8
    bsrc = jnp.pad(bsrc, (0, Esl_p - Esl), constant_values=0)
    bdst = jnp.pad(bdst, (0, Esl_p - Esl), constant_values=N)

    # rbf edges: pad E to a sublane multiple (padded output rows are dropped);
    # pad the radial contraction dim to the bf16 sublane pack (unmasked MXU feed).
    Ep = -(-E // 8) * 8
    i_p = jnp.pad(i_idx.astype(jnp.int32), (0, Ep - E))
    j_p = jnp.pad(j_idx.astype(jnp.int32), (0, Ep - E))
    Rp = -(-R // 16) * 16
    rbf_p = jnp.pad(rbf.astype(f32), ((0, Ep - E), (0, Rp - R)))
    wrbf_p = jnp.pad(params['wrbf'], ((0, Rp - R), (0, 0)))

    # block-diagonal attention weights (heads*H, heads): both heads' a_src /
    # a_dst columns come out of single MXU dots inside the kernel.
    eye = jnp.eye(heads, dtype=f32)
    asrcW = (params['att_src'][:, :, None] * eye[:, None, :]).reshape(HH, heads)
    adstW = (params['att_dst'][:, :, None] * eye[:, None, :]).reshape(HH, heads)

    # lin_output row blocks: [W_i | W_j] fused into one (H, 2B) weight.
    wout_ij = jnp.concatenate([params['wout'][:H], params['wout'][H:2 * H]], axis=1)
    wout_rbf = params['wout'][2 * H:]

    inputs = [
        emb.astype(f32),
        rbf_p,
        bsrc.reshape(Esl_p, 1),
        bdst.reshape(Esl_p, 1),
        i_p.reshape(Ep, 1),
        j_p.reshape(Ep, 1),
        params['wgat'].astype(bf16),
        asrcW.astype(bf16),
        adstW.astype(bf16),
        params['gat_bias'].reshape(1, HH).astype(f32),
        params['wlg'].astype(bf16),
        params['blg'].reshape(1, H).astype(f32),
        wrbf_p.astype(bf16),
        params['brbf'].reshape(1, H).astype(f32),
        wout_ij.astype(bf16),
        wout_rbf.astype(bf16),
        params['bout'].reshape(1, B).astype(f32),
    ]

    in_bytes = sum(int(np.prod(x.shape)) * x.dtype.itemsize for x in inputs)
    out_bytes = 4 * (Ep * B + N * H)
    mask_bytes = 2 * (2 * Esl_p * N + Ep * 2 * N)                  # bf16 masks
    act_bytes = 4 * (2 * Esl_p * (HH + heads) + 2 * N * (HH + heads)
                     + Ep * (Rp + H + B) + 4 * N * H)
    vmem_limit = int(min(64 * 2 ** 20,
                         max(32 * 2 ** 20,
                             4 * (in_bytes + out_bytes + mask_bytes + act_bytes))))

    flops = 2 * (N * H * HH + Esl_p * N * (HH + 2 * heads)
                 + N * Esl_p * (HH + heads) + Esl_p * HH * heads + N * HH * heads
                 + N * HH * H + Ep * Rp * H + N * H * 2 * B
                 + Ep * 2 * N * B + Ep * H * B)
    cost = pl.CostEstimate(flops=int(flops),
                           transcendentals=int(Esl_p * heads + N * H + Ep * (H + B)),
                           bytes_accessed=int(in_bytes + out_bytes))

    # TODO(synk): for production graph sizes, tile the edge axes with a
    # pltpu.PrefetchScalarGridSpec grid (scalar-prefetched i/j/src/dst, per-tile
    # masks rebuilt in VMEM, "parallel" edge axis for the 2nd v7x TensorCore and
    # an (E/8, 8*B) lane-dense bond-output slab) instead of this single
    # whole-graph invocation used for the toy problem.
    vmem = pl.BlockSpec(memory_space=pltpu.MemorySpace.VMEM)
    bond_p, x_new = pl.pallas_call(
        _graph_rbf_kernel,
        out_shape=(jax.ShapeDtypeStruct((Ep, B), jnp.float32),
                   jax.ShapeDtypeStruct((N, H), jnp.float32)),
        in_specs=[vmem] * len(inputs),
        out_specs=(vmem, vmem),
        compiler_params=pltpu.CompilerParams(vmem_limit_bytes=vmem_limit),
        cost_estimate=cost,
    )(*inputs)
    return bond_p[:E], x_new


# ----------------------- pure-JAX reference (f32) -----------------------------
def graph_rbf_block_reference(params, emb, rbf, edge_index, i_idx, j_idx):
    N, H = emb.shape
    heads = params['att_src'].shape[0]
    swish = lambda y: y * jax.nn.sigmoid(y)
    loops = jnp.arange(N, dtype=jnp.int32)
    src = jnp.concatenate([edge_index[0].astype(jnp.int32), loops])
    dst = jnp.concatenate([edge_index[1].astype(jnp.int32), loops])

    xh_all = emb @ params['wgat']                       # (N, heads*H)
    acc = jnp.zeros((N, H), jnp.float32)
    for h in range(heads):
        xh = xh_all[:, h * H:(h + 1) * H]
        a_s = xh @ params['att_src'][h]
        a_d = xh @ params['att_dst'][h]
        e = a_s[src] + a_d[dst]
        e = jnp.where(e > 0, e, 0.2 * e)
        e = e - jax.ops.segment_max(e, dst, num_segments=N)[dst]
        ee = jnp.exp(e)
        den = jax.ops.segment_sum(ee, dst, num_segments=N) + 1e-16
        alpha = ee / den[dst]
        msg = xh[src] * alpha[:, None]
        gat = (jax.ops.segment_sum(msg, dst, num_segments=N)
               + params['gat_bias'][h * H:(h + 1) * H])
        xg = gat + emb
        mu = jnp.mean(xg, axis=-1, keepdims=True)
        var = jnp.mean((xg - mu) ** 2, axis=-1, keepdims=True)
        xn = (xg - mu) / jnp.sqrt(var + 1e-5)
        acc = acc + xn @ params['wlg'][h * H:(h + 1) * H]
    x_new = swish(acc + params['blg'])
    rbf_h = swish(rbf @ params['wrbf'] + params['brbf'])
    y = (x_new[i_idx] @ params['wout'][:H] + x_new[j_idx] @ params['wout'][H:2 * H]
         + rbf_h @ params['wout'][2 * H:] + params['bout'])
    return swish(y), x_new


# ------------------------------ parameters ------------------------------------
def init_params(key):
    H, R, B, heads = HIDDEN, NUM_RADIAL, BOND_CHANNELS, HEADS
    ks = jax.random.split(key, 10)

    def lin_w(k, fin, fout):
        return jax.random.normal(k, (fin, fout), jnp.float32) / np.sqrt(fin)

    return {
        'wgat': lin_w(ks[0], H, heads * H),                          # GATConv.lin
        'att_src': jax.random.normal(ks[1], (heads, H), jnp.float32) * 0.1,
        'att_dst': jax.random.normal(ks[2], (heads, H), jnp.float32) * 0.1,
        'gat_bias': jax.random.normal(ks[3], (heads * H,), jnp.float32) * 0.01,
        'wrbf': lin_w(ks[4], R, H),
        'brbf': jax.random.normal(ks[5], (H,), jnp.float32) * 0.01,
        'wlg': lin_w(ks[6], heads * H, H),
        'blg': jax.random.normal(ks[7], (H,), jnp.float32) * 0.01,
        'wout': lin_w(ks[8], 3 * H, B),
        'bout': jax.random.normal(ks[9], (B,), jnp.float32) * 0.01,
    }


# --------------------------------- driver -------------------------------------
if __name__ == "__main__":
    key = jax.random.PRNGKey(0)
    k_emb, k_rbf, k_param = jax.random.split(key, 3)

    N, per = NUM_NODES, NUM_NODES // NUM_GRAPHS
    # covalent "bonds": bidirectional chain inside each graph (edges for the GAT)
    bsrc, bdst = [], []
    for g in range(NUM_GRAPHS):
        base = g * per
        for v in range(per - 1):
            bsrc += [base + v, base + v + 1]
            bdst += [base + v + 1, base + v]
    edge_index = jnp.asarray(np.array([bsrc, bdst], dtype=np.int32))

    # "radius graph" edges (i = target, j = source): all ordered pairs inside
    # each graph; these index the per-edge rbf features like in the parent model
    ii, jj = [], []
    for g in range(NUM_GRAPHS):
        base = g * per
        for a in range(per):
            for b in range(per):
                if a != b:
                    ii.append(base + a)
                    jj.append(base + b)
    i_idx = jnp.asarray(np.array(ii, dtype=np.int32))
    j_idx = jnp.asarray(np.array(jj, dtype=np.int32))
    E = int(i_idx.shape[0])

    emb = jax.random.normal(k_emb, (N, HIDDEN), jnp.float32)
    rbf = jax.random.normal(k_rbf, (E, NUM_RADIAL), jnp.float32)
    params = init_params(k_param)

    fwd = jax.jit(graph_rbf_block)
    bond_x, x_new = fwd(params, emb, rbf, edge_index, i_idx, j_idx)
    bond_x, x_new = jax.block_until_ready((bond_x, x_new))

    assert bond_x.shape == (E, BOND_CHANNELS)
    assert x_new.shape == (N, HIDDEN)
    assert bool(jnp.all(jnp.isfinite(bond_x))) and bool(jnp.all(jnp.isfinite(x_new)))

    # pure-JAX f32 reference check (kernel uses bf16 matmuls -> loose tolerance)
    ref_bond, ref_x = graph_rbf_block_reference(params, emb, rbf,
                                                edge_index, i_idx, j_idx)
    np.testing.assert_allclose(np.asarray(x_new), np.asarray(ref_x),
                               rtol=0.12, atol=0.08)
    np.testing.assert_allclose(np.asarray(bond_x), np.asarray(ref_bond),
                               rtol=0.12, atol=0.08)

    print("KERNEL_OK")
</pallas_src>

<mosaic_0001>
module attributes {stable_mosaic.version = 11 : i64} {
  func.func @_graph_rbf_kernel(%arg0: memref<12x32xf32, #tpu.memory_space<vmem>>, %arg1: memref<64x16xf32, #tpu.memory_space<vmem>>, %arg2: memref<32x1xi32, #tpu.memory_space<vmem>>, %arg3: memref<32x1xi32, #tpu.memory_space<vmem>>, %arg4: memref<64x1xi32, #tpu.memory_space<vmem>>, %arg5: memref<64x1xi32, #tpu.memory_space<vmem>>, %arg6: memref<32x64xbf16, #tpu.memory_space<vmem>>, %arg7: memref<64x2xbf16, #tpu.memory_space<vmem>>, %arg8: memref<64x2xbf16, #tpu.memory_space<vmem>>, %arg9: memref<1x64xf32, #tpu.memory_space<vmem>>, %arg10: memref<64x32xbf16, #tpu.memory_space<vmem>>, %arg11: memref<1x32xf32, #tpu.memory_space<vmem>>, %arg12: memref<16x32xbf16, #tpu.memory_space<vmem>>, %arg13: memref<1x32xf32, #tpu.memory_space<vmem>>, %arg14: memref<32x32xbf16, #tpu.memory_space<vmem>>, %arg15: memref<32x16xbf16, #tpu.memory_space<vmem>>, %arg16: memref<1x16xf32, #tpu.memory_space<vmem>>, %arg17: memref<64x16xf32, #tpu.memory_space<vmem>>, %arg18: memref<12x32xf32, #tpu.memory_space<vmem>>) attributes {dimension_semantics = [], scalar_prefetch = 0 : i64, scratch_operands = 0 : i64, tpu.core_type = #tpu.core_type<tc>} {
    %c0 = arith.constant 0 : index
    %c0_0 = arith.constant 0 : index
    %0 = vector.load %arg0[%c0, %c0_0] : memref<12x32xf32, #tpu.memory_space<vmem>>, vector<12x32xf32>
    %1 = tpu.iota {dimensions = array<i32: 1>} : vector<32x12xi32>
    %c0_1 = arith.constant 0 : index
    %c0_2 = arith.constant 0 : index
    %2 = vector.load %arg3[%c0_1, %c0_2] : memref<32x1xi32, #tpu.memory_space<vmem>>, vector<32x1xi32>
    %3 = vector.broadcast %2 : vector<32x1xi32> to vector<32x12xi32>
    %4 = arith.cmpi eq, %1, %3 : vector<32x12xi32>
    %c0_3 = arith.constant 0 : index
    %c0_4 = arith.constant 0 : index
    %5 = vector.load %arg2[%c0_3, %c0_4] : memref<32x1xi32, #tpu.memory_space<vmem>>, vector<32x1xi32>
    %6 = vector.broadcast %5 : vector<32x1xi32> to vector<32x12xi32>
    %7 = arith.cmpi eq, %1, %6 : vector<32x12xi32>
    %8 = arith.extui %7 : vector<32x12xi1> to vector<32x12xi32>
    %9 = arith.sitofp %8 : vector<32x12xi32> to vector<32x12xf32>
    %10 = arith.truncf %9 : vector<32x12xf32> to vector<32x12xbf16>
    %11 = arith.extui %4 : vector<32x12xi1> to vector<32x12xi32>
    %12 = arith.sitofp %11 : vector<32x12xi32> to vector<32x12xf32>
    %13 = arith.truncf %12 : vector<32x12xf32> to vector<32x12xbf16>
    %c0_5 = arith.constant 0 : index
    %c0_6 = arith.constant 0 : index
    %14 = vector.load %arg6[%c0_5, %c0_6] : memref<32x64xbf16, #tpu.memory_space<vmem>>, vector<32x64xbf16>
    %15 = arith.truncf %0 : vector<12x32xf32> to vector<12x32xbf16>
    %cst = arith.constant dense<0.000000e+00> : vector<12x64xf32>
    %16 = tpu.matmul %15, %14, %cst {dimension_numbers = #tpu.dot_dimension_numbers<[1], [0], [0], [1], [0, 0, 1, 1], [], []>} : vector<12x32xbf16>, vector<32x64xbf16>, vector<12x64xf32> -> vector<12x64xf32>
    %17 = arith.truncf %16 : vector<12x64xf32> to vector<12x64xbf16>
    %cst_7 = arith.constant dense<0.000000e+00> : vector<32x64xf32>
    %18 = tpu.matmul %10, %17, %cst_7 {dimension_numbers = #tpu.dot_dimension_numbers<[1], [0], [0], [1], [0, 0, 1, 1], [], []>} : vector<32x12xbf16>, vector<12x64xbf16>, vector<32x64xf32> -> vector<32x64xf32>
    %c0_8 = arith.constant 0 : index
    %c0_9 = arith.constant 0 : index
    %19 = vector.load %arg7[%c0_8, %c0_9] : memref<64x2xbf16, #tpu.memory_space<vmem>>, vector<64x2xbf16>
    %20 = arith.truncf %18 : vector<32x64xf32> to vector<32x64xbf16>
    %cst_10 = arith.constant dense<0.000000e+00> : vector<32x2xf32>
    %21 = tpu.matmul %20, %19, %cst_10 {dimension_numbers = #tpu.dot_dimension_numbers<[1], [0], [0], [1], [0, 0, 1, 1], [], []>} : vector<32x64xbf16>, vector<64x2xbf16>, vector<32x2xf32> -> vector<32x2xf32>
    %c0_11 = arith.constant 0 : index
    %c0_12 = arith.constant 0 : index
    %22 = vector.load %arg8[%c0_11, %c0_12] : memref<64x2xbf16, #tpu.memory_space<vmem>>, vector<64x2xbf16>
    %23 = arith.truncf %16 : vector<12x64xf32> to vector<12x64xbf16>
    %cst_13 = arith.constant dense<0.000000e+00> : vector<12x2xf32>
    %24 = tpu.matmul %23, %22, %cst_13 {dimension_numbers = #tpu.dot_dimension_numbers<[1], [0], [0], [1], [0, 0, 1, 1], [], []>} : vector<12x64xbf16>, vector<64x2xbf16>, vector<12x2xf32> -> vector<12x2xf32>
    %25 = arith.truncf %24 : vector<12x2xf32> to vector<12x2xbf16>
    %cst_14 = arith.constant dense<0.000000e+00> : vector<32x2xf32>
    %26 = tpu.matmul %13, %25, %cst_14 {dimension_numbers = #tpu.dot_dimension_numbers<[1], [0], [0], [1], [0, 0, 1, 1], [], []>} : vector<32x12xbf16>, vector<12x2xbf16>, vector<32x2xf32> -> vector<32x2xf32>
    %27 = arith.addf %21, %26 : vector<32x2xf32>
    %cst_15 = arith.constant 0.000000e+00 : f32
    %28 = vector.broadcast %cst_15 : f32 to vector<32x2xf32>
    %29 = arith.cmpf ogt, %27, %28 : vector<32x2xf32>
    %cst_16 = arith.constant 2.000000e-01 : f32
    %30 = vector.broadcast %cst_16 : f32 to vector<32x2xf32>
    %31 = arith.mulf %30, %27 : vector<32x2xf32>
    %32 = arith.select %29, %27, %31 : vector<32x2xi1>, vector<32x2xf32>
    %33 = vector.extract_strided_slice %32 {offsets = [0, 0], sizes = [32, 1], strides = [1, 1]} : vector<32x2xf32> to vector<32x1xf32>
    %cst_17 = arith.constant -1.000000e+30 : f32
    %34 = vector.shape_cast %33 : vector<32x1xf32> to vector<32x1xf32>
    %35 = vector.broadcast %34 : vector<32x1xf32> to vector<32x12xf32>
    %36 = vector.broadcast %cst_17 : f32 to vector<32x12xf32>
    %37 = arith.select %4, %35, %36 : vector<32x12xi1>, vector<32x12xf32>
    %cst_18 = arith.constant dense<0xFF800000> : vector<12xf32>
    %38 = vector.multi_reduction <maximumf>, %37, %cst_18 [0] : vector<32x12xf32> to vector<12xf32>
    %39 = vector.shape_cast %38 : vector<12xf32> to vector<1x12xf32>
    %40 = vector.extract_strided_slice %32 {offsets = [0, 1], sizes = [32, 1], strides = [1, 1]} : vector<32x2xf32> to vector<32x1xf32>
    %cst_19 = arith.constant -1.000000e+30 : f32
    %41 = vector.shape_cast %40 : vector<32x1xf32> to vector<32x1xf32>
    %42 = vector.broadcast %41 : vector<32x1xf32> to vector<32x12xf32>
    %43 = vector.broadcast %cst_19 : f32 to vector<32x12xf32>
    %44 = arith.select %4, %42, %43 : vector<32x12xi1>, vector<32x12xf32>
    %cst_20 = arith.constant dense<0xFF800000> : vector<12xf32>
    %45 = vector.multi_reduction <maximumf>, %44, %cst_20 [0] : vector<32x12xf32> to vector<12xf32>
    %46 = vector.shape_cast %45 : vector<12xf32> to vector<1x12xf32>
    %47 = tpu.concatenate %39, %46 in 0 : vector<1x12xf32>, vector<1x12xf32> -> vector<2x12xf32>
    %48 = arith.truncf %47 : vector<2x12xf32> to vector<2x12xbf16>
    %cst_21 = arith.constant dense<0.000000e+00> : vector<32x2xf32>
    %49 = tpu.matmul %13, %48, %cst_21 {dimension_numbers = #tpu.dot_dimension_numbers<[1], [1], [0], [0], [0, 0, 1, 0], [], []>} : vector<32x12xbf16>, vector<2x12xbf16>, vector<32x2xf32> -> vector<32x2xf32>
    %50 = arith.subf %32, %49 : vector<32x2xf32>
    %51 = math.exp %50 : vector<32x2xf32>
    %52 = vector.extract_strided_slice %18 {offsets = [0, 0], sizes = [32, 32], strides = [1, 1]} : vector<32x64xf32> to vector<32x32xf32>
    %53 = vector.extract_strided_slice %51 {offsets = [0, 0], sizes = [32, 1], strides = [1, 1]} : vector<32x2xf32> to vector<32x1xf32>
    %54 = vector.broadcast %53 : vector<32x1xf32> to vector<32x32xf32>
    %55 = arith.mulf %52, %54 : vector<32x32xf32>
    %56 = vector.extract_strided_slice %18 {offsets = [0, 32], sizes = [32, 32], strides = [1, 1]} : vector<32x64xf32> to vector<32x32xf32>
    %57 = vector.extract_strided_slice %51 {offsets = [0, 1], sizes = [32, 1], strides = [1, 1]} : vector<32x2xf32> to vector<32x1xf32>
    %58 = vector.broadcast %57 : vector<32x1xf32> to vector<32x32xf32>
    %59 = arith.mulf %56, %58 : vector<32x32xf32>
    %60 = tpu.concatenate %55, %59, %51 in 1 : vector<32x32xf32>, vector<32x32xf32>, vector<32x2xf32> -> vector<32x66xf32>
    %61 = arith.truncf %60 : vector<32x66xf32> to vector<32x66xbf16>
    %cst_22 = arith.constant dense<0.000000e+00> : vector<12x66xf32>
    %62 = tpu.matmul %13, %61, %cst_22 {dimension_numbers = #tpu.dot_dimension_numbers<[0], [0], [1], [1], [0, 1, 1, 1], [], []>} : vector<32x12xbf16>, vector<32x66xbf16>, vector<12x66xf32> -> vector<12x66xf32>
    %c0_23 = arith.constant 0 : index
    %c0_24 = arith.constant 0 : index
    %63 = vector.load %arg9[%c0_23, %c0_24] : memref<1x64xf32, #tpu.memory_space<vmem>>, vector<1x64xf32>
    %64 = vector.extract_strided_slice %62 {offsets = [0, 64], sizes = [12, 1], strides = [1, 1]} : vector<12x66xf32> to vector<12x1xf32>
    %cst_25 = arith.constant 1.000000e-16 : f32
    %65 = vector.broadcast %cst_25 : f32 to vector<12x1xf32>
    %66 = arith.addf %64, %65 : vector<12x1xf32>
    %67 = vector.extract_strided_slice %62 {offsets = [0, 0], sizes = [12, 32], strides = [1, 1]} : vector<12x66xf32> to vector<12x32xf32>
    %68 = vector.broadcast %66 : vector<12x1xf32> to vector<12x32xf32>
    %69 = arith.divf %67, %68 : vector<12x32xf32>
    %70 = vector.extract_strided_slice %63 {offsets = [0, 0], sizes = [1, 32], strides = [1, 1]} : vector<1x64xf32> to vector<1x32xf32>
    %71 = vector.broadcast %70 : vector<1x32xf32> to vector<12x32xf32>
    %72 = arith.addf %69, %71 : vector<12x32xf32>
    %73 = arith.addf %72, %0 : vector<12x32xf32>
    %cst_26 = arith.constant dense<0.000000e+00> : vector<12xf32>
    %74 = vector.multi_reduction <add>, %73, %cst_26 [1] : vector<12x32xf32> to vector<12xf32>
    %75 = vector.shape_cast %74 : vector<12xf32> to vector<12x1xf32>
    %cst_27 = arith.constant 3.200000e+01 : f32
    %76 = vector.broadcast %cst_27 : f32 to vector<12x1xf32>
    %77 = arith.divf %75, %76 : vector<12x1xf32>
    %78 = vector.broadcast %77 : vector<12x1xf32> to vector<12x32xf32>
    %79 = arith.subf %73, %78 : vector<12x32xf32>
    %80 = arith.mulf %79, %79 : vector<12x32xf32>
    %cst_28 = arith.constant dense<0.000000e+00> : vector<12xf32>
    %81 = vector.multi_reduction <add>, %80, %cst_28 [1] : vector<12x32xf32> to vector<12xf32>
    %82 = vector.shape_cast %81 : vector<12xf32> to vector<12x1xf32>
    %cst_29 = arith.constant 3.200000e+01 : f32
    %83 = vector.broadcast %cst_29 : f32 to vector<12x1xf32>
    %84 = arith.divf %82, %83 : vector<12x1xf32>
    %cst_30 = arith.constant 9.99999974E-6 : f32
    %85 = vector.broadcast %cst_30 : f32 to vector<12x1xf32>
    %86 = arith.addf %84, %85 : vector<12x1xf32>
    %87 = math.rsqrt %86 : vector<12x1xf32>
    %88 = vector.broadcast %87 : vector<12x1xf32> to vector<12x32xf32>
    %89 = arith.mulf %79, %88 : vector<12x32xf32>
    %90 = vector.extract_strided_slice %62 {offsets = [0, 65], sizes = [12, 1], strides = [1, 1]} : vector<12x66xf32> to vector<12x1xf32>
    %cst_31 = arith.constant 1.000000e-16 : f32
    %91 = vector.broadcast %cst_31 : f32 to vector<12x1xf32>
    %92 = arith.addf %90, %91 : vector<12x1xf32>
    %93 = vector.extract_strided_slice %62 {offsets = [0, 32], sizes = [12, 32], strides = [1, 1]} : vector<12x66xf32> to vector<12x32xf32>
    %94 = vector.broadcast %92 : vector<12x1xf32> to vector<12x32xf32>
    %95 = arith.divf %93, %94 : vector<12x32xf32>
    %96 = vector.extract_strided_slice %63 {offsets = [0, 32], sizes = [1, 32], strides = [1, 1]} : vector<1x64xf32> to vector<1x32xf32>
    %97 = vector.broadcast %96 : vector<1x32xf32> to vector<12x32xf32>
    %98 = arith.addf %95, %97 : vector<12x32xf32>
    %99 = arith.addf %98, %0 : vector<12x32xf32>
    %cst_32 = arith.constant dense<0.000000e+00> : vector<12xf32>
    %100 = vector.multi_reduction <add>, %99, %cst_32 [1] : vector<12x32xf32> to vector<12xf32>
    %101 = vector.shape_cast %100 : vector<12xf32> to vector<12x1xf32>
    %cst_33 = arith.constant 3.200000e+01 : f32
    %102 = vector.broadcast %cst_33 : f32 to vector<12x1xf32>
    %103 = arith.divf %101, %102 : vector<12x1xf32>
    %104 = vector.broadcast %103 : vector<12x1xf32> to vector<12x32xf32>
    %105 = arith.subf %99, %104 : vector<12x32xf32>
    %106 = arith.mulf %105, %105 : vector<12x32xf32>
    %cst_34 = arith.constant dense<0.000000e+00> : vector<12xf32>
    %107 = vector.multi_reduction <add>, %106, %cst_34 [1] : vector<12x32xf32> to vector<12xf32>
    %108 = vector.shape_cast %107 : vector<12xf32> to vector<12x1xf32>
    %cst_35 = arith.constant 3.200000e+01 : f32
    %109 = vector.broadcast %cst_35 : f32 to vector<12x1xf32>
    %110 = arith.divf %108, %109 : vector<12x1xf32>
    %cst_36 = arith.constant 9.99999974E-6 : f32
    %111 = vector.broadcast %cst_36 : f32 to vector<12x1xf32>
    %112 = arith.addf %110, %111 : vector<12x1xf32>
    %113 = math.rsqrt %112 : vector<12x1xf32>
    %114 = vector.broadcast %113 : vector<12x1xf32> to vector<12x32xf32>
    %115 = arith.mulf %105, %114 : vector<12x32xf32>
    %116 = tpu.concatenate %89, %115 in 1 : vector<12x32xf32>, vector<12x32xf32> -> vector<12x64xf32>
    %c0_37 = arith.constant 0 : index
    %c0_38 = arith.constant 0 : index
    %117 = vector.load %arg10[%c0_37, %c0_38] : memref<64x32xbf16, #tpu.memory_space<vmem>>, vector<64x32xbf16>
    %118 = arith.truncf %116 : vector<12x64xf32> to vector<12x64xbf16>
    %cst_39 = arith.constant dense<0.000000e+00> : vector<12x32xf32>
    %119 = tpu.matmul %118, %117, %cst_39 {dimension_numbers = #tpu.dot_dimension_numbers<[1], [0], [0], [1], [0, 0, 1, 1], [], []>} : vector<12x64xbf16>, vector<64x32xbf16>, vector<12x32xf32> -> vector<12x32xf32>
    %c0_40 = arith.constant 0 : index
    %c0_41 = arith.constant 0 : index
    %120 = vector.load %arg11[%c0_40, %c0_41] : memref<1x32xf32, #tpu.memory_space<vmem>>, vector<1x32xf32>
    %121 = vector.broadcast %120 : vector<1x32xf32> to vector<12x32xf32>
    %122 = arith.addf %119, %121 : vector<12x32xf32>
    %cst_42 = arith.constant 0.000000e+00 : f32
    %123 = vector.broadcast %cst_42 : f32 to vector<12x32xf32>
    %124 = arith.subf %123, %122 : vector<12x32xf32>
    %125 = math.exp %124 : vector<12x32xf32>
    %cst_43 = arith.constant 1.000000e+00 : f32
    %126 = vector.broadcast %cst_43 : f32 to vector<12x32xf32>
    %127 = arith.addf %126, %125 : vector<12x32xf32>
    %128 = tpu.reciprocal %127 {approx = true} : vector<12x32xf32> -> vector<12x32xf32>
    %129 = arith.mulf %122, %128 : vector<12x32xf32>
    %c0_44 = arith.constant 0 : index
    %c0_45 = arith.constant 0 : index
    %130 = vector.load %arg18[%c0_44, %c0_45] : memref<12x32xf32, #tpu.memory_space<vmem>>, vector<12x32xf32>
    tpu.vector_store %arg18[%c0_44, %c0_45], %129 {strides = array<i32>} : memref<12x32xf32, #tpu.memory_space<vmem>>, vector<12x32xf32>,
    %131 = tpu.iota {dimensions = array<i32: 1>} : vector<64x24xi32>
    %c0_46 = arith.constant 0 : index
    %c0_47 = arith.constant 0 : index
    %132 = vector.load %arg4[%c0_46, %c0_47] : memref<64x1xi32, #tpu.memory_space<vmem>>, vector<64x1xi32>
    %133 = vector.broadcast %132 : vector<64x1xi32> to vector<64x24xi32>
    %134 = arith.cmpi eq, %131, %133 : vector<64x24xi32>
    %c0_48 = arith.constant 0 : index
    %c0_49 = arith.constant 0 : index
    %135 = vector.load %arg5[%c0_48, %c0_49] : memref<64x1xi32, #tpu.memory_space<vmem>>, vector<64x1xi32>
    %c12_i32 = arith.constant 12 : i32
    %136 = vector.broadcast %c12_i32 : i32 to vector<64x1xi32>
    %137 = arith.addi %135, %136 : vector<64x1xi32>
    %138 = vector.broadcast %137 : vector<64x1xi32> to vector<64x24xi32>
    %139 = arith.cmpi eq, %131, %138 : vector<64x24xi32>
    %140 = arith.ori %134, %139 : vector<64x24xi1>
    %141 = arith.extui %140 : vector<64x24xi1> to vector<64x24xi32>
    %142 = arith.sitofp %141 : vector<64x24xi32> to vector<64x24xf32>
    %143 = arith.truncf %142 : vector<64x24xf32> to vector<64x24xbf16>
    %c0_50 = arith.constant 0 : index
    %c0_51 = arith.constant 0 : index
    %144 = vector.load %arg1[%c0_50, %c0_51] : memref<64x16xf32, #tpu.memory_space<vmem>>, vector<64x16xf32>
    %c0_52 = arith.constant 0 : index
    %c0_53 = arith.constant 0 : index
    %145 = vector.load %arg12[%c0_52, %c0_53] : memref<16x32xbf16, #tpu.memory_space<vmem>>, vector<16x32xbf16>
    %146 = arith.truncf %144 : vector<64x16xf32> to vector<64x16xbf16>
    %cst_54 = arith.constant dense<0.000000e+00> : vector<64x32xf32>
    %147 = tpu.matmul %146, %145, %cst_54 {dimension_numbers = #tpu.dot_dimension_numbers<[1], [0], [0], [1], [0, 0, 1, 1], [], []>} : vector<64x16xbf16>, vector<16x32xbf16>, vector<64x32xf32> -> vector<64x32xf32>
    %c0_55 = arith.constant 0 : index
    %c0_56 = arith.constant 0 : index
    %148 = vector.load %arg13[%c0_55, %c0_56] : memref<1x32xf32, #tpu.memory_space<vmem>>, vector<1x32xf32>
    %149 = vector.broadcast %148 : vector<1x32xf32> to vector<64x32xf32>
    %150 = arith.addf %147, %149 : vector<64x32xf32>
    %cst_57 = arith.constant 0.000000e+00 : f32
    %151 = vector.broadcast %cst_57 : f32 to vector<64x32xf32>
    %152 = arith.subf %151, %150 : vector<64x32xf32>
    %153 = math.exp %152 : vector<64x32xf32>
    %cst_58 = arith.constant 1.000000e+00 : f32
    %154 = vector.broadcast %cst_58 : f32 to vector<64x32xf32>
    %155 = arith.addf %154, %153 : vector<64x32xf32>
    %156 = tpu.reciprocal %155 {approx = true} : vector<64x32xf32> -> vector<64x32xf32>
    %157 = arith.mulf %150, %156 : vector<64x32xf32>
    %c0_59 = arith.constant 0 : index
    %c0_60 = arith.constant 0 : index
    %158 = vector.load %arg14[%c0_59, %c0_60] : memref<32x32xbf16, #tpu.memory_space<vmem>>, vector<32x32xbf16>
    %159 = arith.truncf %129 : vector<12x32xf32> to vector<12x32xbf16>
    %cst_61 = arith.constant dense<0.000000e+00> : vector<12x32xf32>
    %160 = tpu.matmul %159, %158, %cst_61 {dimension_numbers = #tpu.dot_dimension_numbers<[1], [0], [0], [1], [0, 0, 1, 1], [], []>} : vector<12x32xbf16>, vector<32x32xbf16>, vector<12x32xf32> -> vector<12x32xf32>
    %161 = vector.extract_strided_slice %160 {offsets = [0, 0], sizes = [12, 16], strides = [1, 1]} : vector<12x32xf32> to vector<12x16xf32>
    %162 = vector.extract_strided_slice %160 {offsets = [0, 16], sizes = [12, 16], strides = [1, 1]} : vector<12x32xf32> to vector<12x16xf32>
    %163 = tpu.concatenate %161, %162 in 0 : vector<12x16xf32>, vector<12x16xf32> -> vector<24x16xf32>
    %164 = arith.truncf %163 : vector<24x16xf32> to vector<24x16xbf16>
    %cst_62 = arith.constant dense<0.000000e+00> : vector<64x16xf32>
    %165 = tpu.matmul %143, %164, %cst_62 {dimension_numbers = #tpu.dot_dimension_numbers<[1], [0], [0], [1], [0, 0, 1, 1], [], []>} : vector<64x24xbf16>, vector<24x16xbf16>, vector<64x16xf32> -> vector<64x16xf32>
    %c0_63 = arith.constant 0 : index
    %c0_64 = arith.constant 0 : index
    %166 = vector.load %arg15[%c0_63, %c0_64] : memref<32x16xbf16, #tpu.memory_space<vmem>>, vector<32x16xbf16>
    %167 = arith.truncf %157 : vector<64x32xf32> to vector<64x32xbf16>
    %cst_65 = arith.constant dense<0.000000e+00> : vector<64x16xf32>
    %168 = tpu.matmul %167, %166, %cst_65 {dimension_numbers = #tpu.dot_dimension_numbers<[1], [0], [0], [1], [0, 0, 1, 1], [], []>} : vector<64x32xbf16>, vector<32x16xbf16>, vector<64x16xf32> -> vector<64x16xf32>
    %169 = arith.addf %165, %168 : vector<64x16xf32>
    %c0_66 = arith.constant 0 : index
    %c0_67 = arith.constant 0 : index
    %170 = vector.load %arg16[%c0_66, %c0_67] : memref<1x16xf32, #tpu.memory_space<vmem>>, vector<1x16xf32>
    %171 = vector.broadcast %170 : vector<1x16xf32> to vector<64x16xf32>
    %172 = arith.addf %169, %171 : vector<64x16xf32>
    %cst_68 = arith.constant 0.000000e+00 : f32
    %173 = vector.broadcast %cst_68 : f32 to vector<64x16xf32>
    %174 = arith.subf %173, %172 : vector<64x16xf32>
    %175 = math.exp %174 : vector<64x16xf32>
    %cst_69 = arith.constant 1.000000e+00 : f32
    %176 = vector.broadcast %cst_69 : f32 to vector<64x16xf32>
    %177 = arith.addf %176, %175 : vector<64x16xf32>
    %178 = tpu.reciprocal %177 {approx = true} : vector<64x16xf32> -> vector<64x16xf32>
    %179 = arith.mulf %172, %178 : vector<64x16xf32>
    %c0_70 = arith.constant 0 : index
    %c0_71 = arith.constant 0 : index
    %180 = vector.load %arg17[%c0_70, %c0_71] : memref<64x16xf32, #tpu.memory_space<vmem>>, vector<64x16xf32>
    tpu.vector_store %arg17[%c0_70, %c0_71], %179 {strides = array<i32>} : memref<64x16xf32, #tpu.memory_space<vmem>>, vector<64x16xf32>,
    return
  }
}

</mosaic_0001>

<llo_original>
// kernel: graph_rbf_block.1
$region0: #{graph_rbf_block.1}
  #allocation0 [shape = 'u32[]', space=smem, size = 0x4, offset = 0x4, fixed_abs, tag = 'smem constant byte address 0x4 - core index']
  #allocation1 [shape = 'u32[144,128]{1,0:T(1,128)}', space=vmem, size = 0x12000, scoped, tag = 'internal scratch']
  %s0 = inlined_call_operand.vmem [shape: f32[12,32], index: 0, kind: input, shape index: {}]
  %s1 = inlined_call_operand.vmem [shape: f32[64,16], index: 1, kind: input, shape index: {}]
  %s2 = inlined_call_operand.vmem [shape: s32[32,1], index: 2, kind: input, shape index: {}]
  %s3 = inlined_call_operand.vmem [shape: s32[32,1], index: 3, kind: input, shape index: {}]
  %s4 = inlined_call_operand.vmem [shape: s32[64,1], index: 4, kind: input, shape index: {}]
  %s5 = inlined_call_operand.vmem [shape: s32[64,1], index: 5, kind: input, shape index: {}]
  %s6 = inlined_call_operand.vmem [shape: bf16[32,64], index: 6, kind: input, shape index: {}]
  %s7 = inlined_call_operand.vmem [shape: bf16[64,2], index: 7, kind: input, shape index: {}]
  %s8 = inlined_call_operand.vmem [shape: bf16[64,2], index: 8, kind: input, shape index: {}]
  %s9 = inlined_call_operand.vmem [shape: f32[1,64], index: 9, kind: input, shape index: {}]
  %s10 = inlined_call_operand.vmem [shape: bf16[64,32], index: 10, kind: input, shape index: {}]
  %s11 = inlined_call_operand.vmem [shape: f32[1,32], index: 11, kind: input, shape index: {}]
  %s12 = inlined_call_operand.vmem [shape: bf16[16,32], index: 12, kind: input, shape index: {}]
  %s13 = inlined_call_operand.vmem [shape: f32[1,32], index: 13, kind: input, shape index: {}]
  %s14 = inlined_call_operand.vmem [shape: bf16[32,32], index: 14, kind: input, shape index: {}]
  %s15 = inlined_call_operand.vmem [shape: bf16[32,16], index: 15, kind: input, shape index: {}]
  %s16 = inlined_call_operand.vmem [shape: f32[1,16], index: 16, kind: input, shape index: {}]
  %s17 = inlined_call_operand.vmem [shape: f32[64,16], index: 17, kind: output, shape index: {0}]
  %s18 = inlined_call_operand.hbm [shape: f32[12,32], index: 18, kind: output, shape index: {1}]
  %19 = xla_tuple %s17, %s18
  %s20 = sld [smem:[#allocation0]]
  $region86: #{graph_rbf_block.1} parent=0
    _
  %s22 = ssub.s32 1, %s20
  %s23 = scalar_select 0, %s22, %s20
  $region1: #{graph_rbf_block.1} parent=0
    #allocation2 [shape = 'u8[8192]{0}', space=vmem, size = 0x2000, scoped, tag = 'output window, operand 1, single buffered']
    #allocation3 [shape = 's32[1]{0}', space=sflag, size = 0x4, scoped, tag = 'scoped memory for graph_rbf_block.1']
    %24 = vsyncpa [#allocation3], 0
    // Predicated region
    $region2: #{graph_rbf_block.1} parent=1 // pred_check
      _
    $region3: #{graph_rbf_block.1} parent=1 // pred_check_branch
      %26 = sbr.rel (0) target = $region5
    $region4: #{graph_rbf_block.1} parent=1 // pred_region
      _
    $region5: #{graph_rbf_block.1} parent=1 // pred_fallthru
      _
    // Predicated region
    $region6: #{graph_rbf_block.1} parent=1 // pred_check
      _
    $region7: #{graph_rbf_block.1} parent=1 // pred_check_branch
      %28 = sbr.rel (0) target = $region9
    $region8: #{graph_rbf_block.1} parent=1 // pred_region
      _
    $region9: #{graph_rbf_block.1} parent=1 // pred_fallthru
      _
    // Predicated region
    $region10: #{graph_rbf_block.1} parent=1 // pred_check
      _
    $region11: #{graph_rbf_block.1} parent=1 // pred_check_branch
      %30 = sbr.rel (0) target = $region13
    $region12: #{graph_rbf_block.1} parent=1 // pred_region
      _
    $region13: #{graph_rbf_block.1} parent=1 // pred_fallthru
      _
    // Predicated region
    $region14: #{graph_rbf_block.1} parent=1 // pred_check
      _
    $region15: #{graph_rbf_block.1} parent=1 // pred_check_branch
      %32 = sbr.rel (0) target = $region17
    $region16: #{graph_rbf_block.1} parent=1 // pred_region
      _
    $region17: #{graph_rbf_block.1} parent=1 // pred_fallthru
      _
    // Predicated region
    $region18: #{graph_rbf_block.1} parent=1 // pred_check
      _
    $region19: #{graph_rbf_block.1} parent=1 // pred_check_branch
      %34 = sbr.rel (0) target = $region21
    $region20: #{graph_rbf_block.1} parent=1 // pred_region
      _
    $region21: #{graph_rbf_block.1} parent=1 // pred_fallthru
      _
    // Predicated region
    $region22: #{graph_rbf_block.1} parent=1 // pred_check
      _
    $region23: #{graph_rbf_block.1} parent=1 // pred_check_branch
      %36 = sbr.rel (0) target = $region25
    $region24: #{graph_rbf_block.1} parent=1 // pred_region
      _
    $region25: #{graph_rbf_block.1} parent=1 // pred_fallthru
      _
    // Predicated region
    $region26: #{graph_rbf_block.1} parent=1 // pred_check
      _
    $region27: #{graph_rbf_block.1} parent=1 // pred_check_branch
      %38 = sbr.rel (0) target = $region29
    $region28: #{graph_rbf_block.1} parent=1 // pred_region
      _
    $region29: #{graph_rbf_block.1} parent=1 // pred_fallthru
      _
    // Predicated region
    $region30: #{graph_rbf_block.1} parent=1 // pred_check
      _
    $region31: #{graph_rbf_block.1} parent=1 // pred_check_branch
      %40 = sbr.rel (0) target = $region33
    $region32: #{graph_rbf_block.1} parent=1 // pred_region
      _
    $region33: #{graph_rbf_block.1} parent=1 // pred_fallthru
      _
    // Predicated region
    $region34: #{graph_rbf_block.1} parent=1 // pred_check
      _
    $region35: #{graph_rbf_block.1} parent=1 // pred_check_branch
      %42 = sbr.rel (0) target = $region37
    $region36: #{graph_rbf_block.1} parent=1 // pred_region
      _
    $region37: #{graph_rbf_block.1} parent=1 // pred_fallthru
      _
    // Predicated region
    $region38: #{graph_rbf_block.1} parent=1 // pred_check
      _
    $region39: #{graph_rbf_block.1} parent=1 // pred_check_branch
      %44 = sbr.rel (0) target = $region41
    $region40: #{graph_rbf_block.1} parent=1 // pred_region
      _
    $region41: #{graph_rbf_block.1} parent=1 // pred_fallthru
      _
    // Predicated region
    $region42: #{graph_rbf_block.1} parent=1 // pred_check
      _
    $region43: #{graph_rbf_block.1} parent=1 // pred_check_branch
      %46 = sbr.rel (0) target = $region45
    $region44: #{graph_rbf_block.1} parent=1 // pred_region
      _
    $region45: #{graph_rbf_block.1} parent=1 // pred_fallthru
      _
    // Predicated region
    $region46: #{graph_rbf_block.1} parent=1 // pred_check
      _
    $region47: #{graph_rbf_block.1} parent=1 // pred_check_branch
      %48 = sbr.rel (0) target = $region49
    $region48: #{graph_rbf_block.1} parent=1 // pred_region
      _
    $region49: #{graph_rbf_block.1} parent=1 // pred_fallthru
      _
    // Predicated region
    $region50: #{graph_rbf_block.1} parent=1 // pred_check
      _
    $region51: #{graph_rbf_block.1} parent=1 // pred_check_branch
      %50 = sbr.rel (0) target = $region53
    $region52: #{graph_rbf_block.1} parent=1 // pred_region
      _
    $region53: #{graph_rbf_block.1} parent=1 // pred_fallthru
      _
    // Predicated region
    $region54: #{graph_rbf_block.1} parent=1 // pred_check
      _
    $region55: #{graph_rbf_block.1} parent=1 // pred_check_branch
      %52 = sbr.rel (0) target = $region57
    $region56: #{graph_rbf_block.1} parent=1 // pred_region
      _
    $region57: #{graph_rbf_block.1} parent=1 // pred_fallthru
      _
    // Predicated region
    $region58: #{graph_rbf_block.1} parent=1 // pred_check
      _
    $region59: #{graph_rbf_block.1} parent=1 // pred_check_branch
      %54 = sbr.rel (0) target = $region61
    $region60: #{graph_rbf_block.1} parent=1 // pred_region
      _
    $region61: #{graph_rbf_block.1} parent=1 // pred_fallthru
      _
    // Predicated region
    $region62: #{graph_rbf_block.1} parent=1 // pred_check
      _
    $region63: #{graph_rbf_block.1} parent=1 // pred_check_branch
      %56 = sbr.rel (0) target = $region65
    $region64: #{graph_rbf_block.1} parent=1 // pred_region
      _
    $region65: #{graph_rbf_block.1} parent=1 // pred_fallthru
      _
    // Predicated region
    $region66: #{graph_rbf_block.1} parent=1 // pred_check
      _
    $region67: #{graph_rbf_block.1} parent=1 // pred_check_branch
      %58 = sbr.rel (0) target = $region69
    $region68: #{graph_rbf_block.1} parent=1 // pred_region
      _
    $region69: #{graph_rbf_block.1} parent=1 // pred_fallthru
      _
    %v60 = vld [vmem:[%s0] sm:$0xff]
    %v61 = vld [vmem:[%s0 + $0x8] sm:$0xf]
    %v62 = vlaneseq
    %v63 = vand.u32 %v62, 127
    %v64 = vld [vmem:[%s3] sm:$0xff]
    %v65 = vld [vmem:[%s3 + $0x8] sm:$0xff]
    %v66 = vld [vmem:[%s3 + $0x10] sm:$0xff]
    %v67 = vld [vmem:[%s3 + $0x18] sm:$0xff]
    %68 = vset.pattern.permute.xlu0 0
    %69 = vperm.xlu0 %68, %v64
    %v70 = vpop.permute.xlu0 %69
    %71 = vset.pattern.permute.xlu0 0
    %72 = vperm.xlu0 %71, %v65
    %v73 = vpop.permute.xlu0 %72
    %74 = vset.pattern.permute.xlu0 0
    %75 = vperm.xlu0 %74, %v66
    %v76 = vpop.permute.xlu0 %75
    %77 = vset.pattern.permute.xlu0 0
    %78 = vperm.xlu0 %77, %v67
    %v79 = vpop.permute.xlu0 %78
    %vm80 = vcmp.eq.s32.totalorder %v63, %v70
    %vm81 = vcmp.eq.s32.totalorder %v63, %v73
    %vm82 = vcmp.eq.s32.totalorder %v63, %v76
    %vm83 = vcmp.eq.s32.totalorder %v63, %v79
    %v84 = vld [vmem:[%s2] sm:$0xff]
    %v85 = vld [vmem:[%s2 + $0x8] sm:$0xff]
    %v86 = vld [vmem:[%s2 + $0x10] sm:$0xff]
    %v87 = vld [vmem:[%s2 + $0x18] sm:$0xff]
    %88 = vset.pattern.permute.xlu0 0
    %89 = vperm.xlu0 %88, %v84
    %v90 = vpop.permute.xlu0 %89
    %91 = vset.pattern.permute.xlu0 0
    %92 = vperm.xlu0 %91, %v85
    %v93 = vpop.permute.xlu0 %92
    %94 = vset.pattern.permute.xlu0 0
    %95 = vperm.xlu0 %94, %v86
    %v96 = vpop.permute.xlu0 %95
    %97 = vset.pattern.permute.xlu0 0
    %98 = vperm.xlu0 %97, %v87
    %v99 = vpop.permute.xlu0 %98
    %vm100 = vcmp.eq.s32.totalorder %v63, %v90
    %vm101 = vcmp.eq.s32.totalorder %v63, %v93
    %vm102 = vcmp.eq.s32.totalorder %v63, %v96
    %vm103 = vcmp.eq.s32.totalorder %v63, %v99
    %v104 = vsel %vm100, 1, 0
    %v105 = vsel %vm101, 1, 0
    %v106 = vsel %vm102, 1, 0
    %v107 = vsel %vm103, 1, 0
    %v108 = vcvt.s32.f32 %v104
    %v109 = vcvt.s32.f32 %v105
    %v110 = vcvt.s32.f32 %v106
    %v111 = vcvt.s32.f32 %v107
    %v112 = vpack.c.bf16 %v109, %v108
    %v113 = vpack.c.bf16 %v111, %v110
    %v114 = vsel %vm80, 1, 0
    %v115 = vsel %vm81, 1, 0
    %v116 = vsel %vm82, 1, 0
    %v117 = vsel %vm83, 1, 0
    %v118 = vcvt.s32.f32 %v114
    %v119 = vcvt.s32.f32 %v115
    %v120 = vcvt.s32.f32 %v116
    %v121 = vcvt.s32.f32 %v117
    %v122 = vpack.c.bf16 %v119, %v118
    %v123 = vpack.c.bf16 %v121, %v120
    %v124 = vld [vmem:[%s6] sm:$0xf]
    %v125 = vld [vmem:[%s6 + $0x4] sm:$0xf]
    %v126 = vld [vmem:[%s6 + $0x8] sm:$0xf]
    %v127 = vld [vmem:[%s6 + $0xc] sm:$0xf]
    %v128 = vpack.c.bf16 %v61, %v60
    %v133 = vunpack.c.l.b16 %v124
    %v134 = vunpack.c.l.b16 %v125
    %v135 = vunpack.c.l.b16 %v126
    %v136 = vunpack.c.l.b16 %v127
    %v137 = vpack.c.b16 %v134, %v133
    %v138 = vpack.c.b16 %v136, %v135
    %vm141 = vcmask 261120
    %v143 = vsel %vm141, %v128, 0
    %145 = vmatprep.subr.bf16.mxu0 0
    %146 = vmatpush1.bf16.msra.mxu0 %v137
    %147 = vmatprep.subr.bf16.mxu0 0
    %148 = vmatpush1.bf16.msra.mxu0 %v138
    %149 = vmatprep.subr.bf16.mxu0 0
    %150 = vmatpush1.bf16.msra.mxu0 0
    %151 = vmatprep.subr.bf16.mxu0 0
    %152 = vmatpush1.bf16.msra.mxu0 0
    %153 = vmatprep.subr.bf16.mxu0 0
    %154 = vmatpush1.bf16.msra.mxu0 0
    %155 = vmatprep.subr.bf16.mxu0 0
    %156 = vmatpush1.bf16.msra.mxu0 0
    %157 = vmatprep.subr.bf16.mxu0 0
    %158 = vmatpush1.bf16.msra.mxu0 0
    %159 = vmatprep.subr.bf16.mxu0 0
    %160 = vmatpush1.bf16.msra.mxu0 0
    %161 = vmatprep.subr.bf16.mxu0 0
    %162 = vmatpush1.bf16.msra.mxu0 0
    %163 = vmatprep.subr.bf16.mxu0 0
    %164 = vmatpush1.bf16.msra.mxu0 0
    %165 = vmatprep.subr.bf16.mxu0 0
    %166 = vmatpush1.bf16.msra.mxu0 0
    %167 = vmatprep.subr.bf16.mxu0 0
    %168 = vmatpush1.bf16.msra.mxu0 0
    %169 = vmatprep.subr.bf16.mxu0 0
    %170 = vmatpush1.bf16.msra.mxu0 0
    %171 = vmatprep.subr.bf16.mxu0 0
    %172 = vmatpush1.bf16.msra.mxu0 0
    %173 = vmatprep.subr.bf16.mxu0 0
    %174 = vmatpush1.bf16.msra.mxu0 0
    %175 = vmatprep.subr.bf16.mxu0 0
    %176 = vmatpush1.bf16.msra.mxu0 0
    %177 = vmatprep.mubr.bf16.mxu0 0
    %178 = vmatmul.mubr.bf16.gmra.mrb[0].mxu0 %v143
    %v179 = vpop.f32.mrb[0].mxu0
    %v180 = vadd.f32 0.0, %v179
    %v181 = vpop.f32.mrb[0].mxu0
    %v182 = vpop.f32.mrb[0].mxu0
    %v183 = vadd.f32 0.0, %v182
    %v184 = vpop.f32.mrb[0].mxu0
    %185 = vdwg.mxu0
    %v186 = vpack.c.bf16 %v183, %v180
    %vm187 = vcmask 97280
    %v189 = vsel %vm187, %v112, 0
    %v192 = vsel %vm187, %v113, 0
    %vm194 = vcmask 1045504
    %v196 = vsel %vm194, %v186, 0
    %198 = vmatprep.subr.bf16.mxu0 0
    %199 = vmatpush1.bf16.msra.mxu0 %v196
    %200 = vmatprep.subr.bf16.mxu0 0
    %201 = vmatpush1.bf16.msra.mxu0 0
    %202 = vmatprep.subr.bf16.mxu0 0
    %203 = vmatpush1.bf16.msra.mxu0 0
    %204 = vmatprep.subr.bf16.mxu0 0
    %205 = vmatpush1.bf16.msra.mxu0 0
    %206 = vmatprep.subr.bf16.mxu0 0
    %207 = vmatpush1.bf16.msra.mxu0 0
    %208 = vmatprep.subr.bf16.mxu0 0
    %209 = vmatpush1.bf16.msra.mxu0 0
    %210 = vmatprep.subr.bf16.mxu0 0
    %211 = vmatpush1.bf16.msra.mxu0 0
    %212 = vmatprep.subr.bf16.mxu0 0
    %213 = vmatpush1.bf16.msra.mxu0 0
    %214 = vmatprep.subr.bf16.mxu0 0
    %215 = vmatpush1.bf16.msra.mxu0 0
    %216 = vmatprep.subr.bf16.mxu0 0
    %217 = vmatpush1.bf16.msra.mxu0 0
    %218 = vmatprep.subr.bf16.mxu0 0
    %219 = vmatpush1.bf16.msra.mxu0 0
    %220 = vmatprep.subr.bf16.mxu0 0
    %221 = vmatpush1.bf16.msra.mxu0 0
    %222 = vmatprep.subr.bf16.mxu0 0
    %223 = vmatpush1.bf16.msra.mxu0 0
    %224 = vmatprep.subr.bf16.mxu0 0
    %225 = vmatpush1.bf16.msra.mxu0 0
    %226 = vmatprep.subr.bf16.mxu0 0
    %227 = vmatpush1.bf16.msra.mxu0 0
    %228 = vmatprep.subr.bf16.mxu0 0
    %229 = vmatpush1.bf16.msra.mxu0 0
    %230 = vmatprep.mubr.bf16.mxu0 0
    %231 = vmatmul.mubr.bf16.gmra.mrb[0].mxu0 %v189
    %v232 = vpop.f32.mrb[0].mxu0
    %v233 = vadd.f32 0.0, %v232
    %v234 = vpop.f32.mrb[0].mxu0
    %v235 = vpop.f32.mrb[0].mxu0
    %v236 = vadd.f32 0.0, %v235
    %v237 = vpop.f32.mrb[0].mxu0
    %238 = vmatprep.mubr.bf16.mxu0 0
    %239 = vmatmul.mubr.bf16.gmra.mrb[0].mxu0 %v192
    %v240 = vpop.f32.mrb[0].mxu0
    %v241 = vadd.f32 0.0, %v240
    %v242 = vpop.f32.mrb[0].mxu0
    %v243 = vpop.f32.mrb[0].mxu0
    %v244 = vadd.f32 0.0, %v243
    %v245 = vpop.f32.mrb[0].mxu0
    %246 = vdwg.mxu0
    %v247 = vld [vmem:[%s7] sm:$0xf]
    %v248 = vld [vmem:[%s7 + $0x4] sm:$0xf]
    %v249 = vld [vmem:[%s7 + $0x8] sm:$0xf]
    %v250 = vld [vmem:[%s7 + $0xc] sm:$0xf]
    %v251 = vld [vmem:[%s7 + $0x10] sm:$0xf]
    %v252 = vld [vmem:[%s7 + $0x14] sm:$0xf]
    %v253 = vld [vmem:[%s7 + $0x18] sm:$0xf]
    %v254 = vld [vmem:[%s7 + $0x1c] sm:$0xf]
    %v255 = vpack.c.bf16 %v236, %v233
    %v256 = vpack.c.bf16 %v244, %v241
    %v257 = vld [vmem:[%s8] sm:$0xf]
    %v258 = vld [vmem:[%s8 + $0x4] sm:$0xf]
    %v259 = vld [vmem:[%s8 + $0x8] sm:$0xf]
    %v260 = vld [vmem:[%s8 + $0xc] sm:$0xf]
    %v261 = vld [vmem:[%s8 + $0x10] sm:$0xf]
    %v262 = vld [vmem:[%s8 + $0x14] sm:$0xf]
    %v263 = vld [vmem:[%s8 + $0x18] sm:$0xf]
    %v264 = vld [vmem:[%s8 + $0x1c] sm:$0xf]
    %v273 = vunpack.c.l.b16 %v257
    %v274 = vunpack.c.l.b16 %v258
    %v275 = vunpack.c.l.b16 %v259
    %v276 = vunpack.c.l.b16 %v260
    %v277 = vunpack.c.l.b16 %v261
    %v278 = vunpack.c.l.b16 %v262
    %v279 = vunpack.c.l.b16 %v263
    %v280 = vunpack.c.l.b16 %v264
    %v281 = vpack.c.b16 %v274, %v273
    %v282 = vpack.c.b16 %v276, %v275
    %v283 = vpack.c.b16 %v278, %v277
    %v284 = vpack.c.b16 %v280, %v279
    %vm289 = vcmask 523264
    %v290 = vsel %vm289, %v186, 0
    %292 = vmatprep.subr.bf16.mxu0 0
    %293 = vmatpush1.bf16.msra.mxu0 %v281
    %294 = vmatprep.subr.bf16.mxu0 0
    %295 = vmatpush1.bf16.msra.mxu0 %v282
    %296 = vmatprep.subr.bf16.mxu0 0
    %297 = vmatpush1.bf16.msra.mxu0 %v283
    %298 = vmatprep.subr.bf16.mxu0 0
    %299 = vmatpush1.bf16.msra.mxu0 %v284
    %300 = vmatprep.subr.bf16.mxu0 0
    %301 = vmatpush1.bf16.msra.mxu0 0
    %302 = vmatprep.subr.bf16.mxu0 0
    %303 = vmatpush1.bf16.msra.mxu0 0
    %304 = vmatprep.subr.bf16.mxu0 0
    %305 = vmatpush1.bf16.msra.mxu0 0
    %306 = vmatprep.subr.bf16.mxu0 0
    %307 = vmatpush1.bf16.msra.mxu0 0
    %308 = vmatprep.subr.bf16.mxu0 0
    %309 = vmatpush1.bf16.msra.mxu0 0
    %310 = vmatprep.subr.bf16.mxu0 0
    %311 = vmatpush1.bf16.msra.mxu0 0
    %312 = vmatprep.subr.bf16.mxu0 0
    %313 = vmatpush1.bf16.msra.mxu0 0
    %314 = vmatprep.subr.bf16.mxu0 0
    %315 = vmatpush1.bf16.msra.mxu0 0
    %316 = vmatprep.subr.bf16.mxu0 0
    %317 = vmatpush1.bf16.msra.mxu0 0
    %318 = vmatprep.subr.bf16.mxu0 0
    %319 = vmatpush1.bf16.msra.mxu0 0
    %320 = vmatprep.subr.bf16.mxu0 0
    %321 = vmatpush1.bf16.msra.mxu0 0
    %322 = vmatprep.subr.bf16.mxu0 0
    %323 = vmatpush1.bf16.msra.mxu0 0
    %324 = vmatprep.mubr.bf16.mxu0 0
    %325 = vmatmul.mubr.bf16.gmra.mrb[0].mxu0 %v290
    %v326 = vpop.f32.mrb[0].mxu0
    %v327 = vadd.f32 0.0, %v326
    %v328 = vpop.f32.mrb[0].mxu0
    %v329 = vpop.f32.mrb[0].mxu0
    %v330 = vadd.f32 0.0, %v329
    %v331 = vpop.f32.mrb[0].mxu0
    %332 = vdwg.mxu0
    %v333 = vpack.c.bf16 %v330, %v327
    %v335 = vsel %vm187, %v122, 0
    %v338 = vsel %vm187, %v123, 0
    %v341 = vsel %vm194, %v333, 0
    %343 = vmatprep.subr.bf16.mxu0 0
    %344 = vmatpush1.bf16.msra.mxu0 %v341
    %345 = vmatprep.subr.bf16.mxu0 0
    %346 = vmatpush1.bf16.msra.mxu0 0
    %347 = vmatprep.subr.bf16.mxu0 0
    %348 = vmatpush1.bf16.msra.mxu0 0
    %349 = vmatprep.subr.bf16.mxu0 0
    %350 = vmatpush1.bf16.msra.mxu0 0
    %351 = vmatprep.subr.bf16.mxu0 0
    %352 = vmatpush1.bf16.msra.mxu0 0
    %353 = vmatprep.subr.bf16.mxu0 0
    %354 = vmatpush1.bf16.msra.mxu0 0
    %355 = vmatprep.subr.bf16.mxu0 0
    %356 = vmatpush1.bf16.msra.mxu0 0
    %357 = vmatprep.subr.bf16.mxu0 0
    %358 = vmatpush1.bf16.msra.mxu0 0
    %359 = vmatprep.subr.bf16.mxu0 0
    %360 = vmatpush1.bf16.msra.mxu0 0
    %361 = vmatprep.subr.bf16.mxu0 0
    %362 = vmatpush1.bf16.msra.mxu0 0
    %363 = vmatprep.subr.bf16.mxu0 0
    %364 = vmatpush1.bf16.msra.mxu0 0
    %365 = vmatprep.subr.bf16.mxu0 0
    %366 = vmatpush1.bf16.msra.mxu0 0
    %367 = vmatprep.subr.bf16.mxu0 0
    %368 = vmatpush1.bf16.msra.mxu0 0
    %369 = vmatprep.subr.bf16.mxu0 0
    %370 = vmatpush1.bf16.msra.mxu0 0
    %371 = vmatprep.subr.bf16.mxu0 0
    %372 = vmatpush1.bf16.msra.mxu0 0
    %373 = vmatprep.subr.bf16.mxu0 0
    %374 = vmatpush1.bf16.msra.mxu0 0
    %375 = vmatprep.mubr.bf16.mxu0 0
    %376 = vmatmul.mubr.bf16.gmra.mrb[0].mxu0 %v335
    %v377 = vpop.f32.mrb[0].mxu0
    %v378 = vadd.f32 0.0, %v377
    %v379 = vpop.f32.mrb[0].mxu0
    %v380 = vpop.f32.mrb[0].mxu0
    %v381 = vadd.f32 0.0, %v380
    %v382 = vpop.f32.mrb[0].mxu0
    %383 = vmatprep.mubr.bf16.mxu0 0
    %384 = vmatmul.mubr.bf16.gmra.mrb[0].mxu0 %v338
    %v385 = vpop.f32.mrb[0].mxu0
    %v386 = vadd.f32 0.0, %v385
    %v387 = vpop.f32.mrb[0].mxu0
    %v388 = vpop.f32.mrb[0].mxu0
    %v389 = vadd.f32 0.0, %v388
    %v390 = vpop.f32.mrb[0].mxu0
    %391 = vdwg.mxu0
    %v400 = vunpack.c.l.b16 %v247
    %v401 = vunpack.c.l.b16 %v248
    %v402 = vunpack.c.l.b16 %v249
    %v403 = vunpack.c.l.b16 %v250
    %v404 = vunpack.c.l.b16 %v251
    %v405 = vunpack.c.l.b16 %v252
    %v406 = vunpack.c.l.b16 %v253
    %v407 = vunpack.c.l.b16 %v254
    %v408 = vpack.c.b16 %v401, %v400
    %v409 = vpack.c.b16 %v403, %v402
    %v410 = vpack.c.b16 %v405, %v404
    %v411 = vpack.c.b16 %v407, %v406
    %v417 = vsel %vm289, %v255, 0
    %v420 = vsel %vm289, %v256, 0
    %422 = vmatprep.subr.bf16.mxu0 0
    %423 = vmatpush1.bf16.msra.mxu0 %v408
    %424 = vmatprep.subr.bf16.mxu0 0
    %425 = vmatpush1.bf16.msra.mxu0 %v409
    %426 = vmatprep.subr.bf16.mxu0 0
    %427 = vmatpush1.bf16.msra.mxu0 %v410
    %428 = vmatprep.subr.bf16.mxu0 0
    %429 = vmatpush1.bf16.msra.mxu0 %v411
    %430 = vmatprep.subr.bf16.mxu0 0
    %431 = vmatpush1.bf16.msra.mxu0 0
    %432 = vmatprep.subr.bf16.mxu0 0
    %433 = vmatpush1.bf16.msra.mxu0 0
    %434 = vmatprep.subr.bf16.mxu0 0
    %435 = vmatpush1.bf16.msra.mxu0 0
    %436 = vmatprep.subr.bf16.mxu0 0
    %437 = vmatpush1.bf16.msra.mxu0 0
    %438 = vmatprep.subr.bf16.mxu0 0
    %439 = vmatpush1.bf16.msra.mxu0 0
    %440 = vmatprep.subr.bf16.mxu0 0
    %441 = vmatpush1.bf16.msra.mxu0 0
    %442 = vmatprep.subr.bf16.mxu0 0
    %443 = vmatpush1.bf16.msra.mxu0 0
    %444 = vmatprep.subr.bf16.mxu0 0
    %445 = vmatpush1.bf16.msra.mxu0 0
    %446 = vmatprep.subr.bf16.mxu0 0
    %447 = vmatpush1.bf16.msra.mxu0 0
    %448 = vmatprep.subr.bf16.mxu0 0
    %449 = vmatpush1.bf16.msra.mxu0 0
    %450 = vmatprep.subr.bf16.mxu0 0
    %451 = vmatpush1.bf16.msra.mxu0 0
    %452 = vmatprep.subr.bf16.mxu0 0
    %453 = vmatpush1.bf16.msra.mxu0 0
    %454 = vmatprep.mubr.bf16.mxu0 0
    %455 = vmatmul.mubr.bf16.gmra.mrb[0].mxu0 %v417
    %v456 = vpop.f32.mrb[0].mxu0
    %v457 = vadd.f32 %v378, %v456
    %v458 = vpop.f32.mrb[0].mxu0
    %v459 = vpop.f32.mrb[0].mxu0
    %v460 = vadd.f32 %v381, %v459
    %v461 = vpop.f32.mrb[0].mxu0
    %462 = vmatprep.mubr.bf16.mxu0 0
    %463 = vmatmul.mubr.bf16.gmra.mrb[0].mxu0 %v420
    %v464 = vpop.f32.mrb[0].mxu0
    %v465 = vadd.f32 %v386, %v464
    %v466 = vpop.f32.mrb[0].mxu0
    %v467 = vpop.f32.mrb[0].mxu0
    %v468 = vadd.f32 %v389, %v467
    %v469 = vpop.f32.mrb[0].mxu0
    %470 = vdwg.mxu0
    %vm471 = vcmp.gt.f32.partialorder %v457, 0.0
    %vm472 = vcmp.gt.f32.partialorder %v460, 0.0
    %vm473 = vcmp.gt.f32.partialorder %v465, 0.0
    %vm474 = vcmp.gt.f32.partialorder %v468, 0.0
    %v475 = vmul.f32 %v457, 0.2
    %v476 = vmul.f32 %v460, 0.2
    %v477 = vmul.f32 %v465, 0.2
    %v478 = vmul.f32 %v468, 0.2
    %v479 = vsel %vm471, %v457, %v475
    %v480 = vsel %vm472, %v460, %v476
    %v481 = vsel %vm473, %v465, %v477
    %v482 = vsel %vm474, %v468, %v478
    %484 = vset.pattern.permute.xlu0 0
    %485 = vperm.xlu0 %484, %v479
    %v486 = vpop.permute.xlu0 %485
    %489 = vset.pattern.permute.xlu0 0
    %490 = vperm.xlu0 %489, %v480
    %v491 = vpop.permute.xlu0 %490
    %494 = vset.pattern.permute.xlu0 0
    %495 = vperm.xlu0 %494, %v481
    %v496 = vpop.permute.xlu0 %495
    %499 = vset.pattern.permute.xlu0 0
    %500 = vperm.xlu0 %499, %v482
    %v501 = vpop.permute.xlu0 %500
    %v503 = vsel %vm80, %v486, -1e+30
    %v504 = vsel %vm81, %v491, -1e+30
    %v505 = vsel %vm82, %v496, -1e+30
    %v506 = vsel %vm83, %v501, -1e+30
    %v507 = vsel %vm187, %v503, -inf
    %v508 = vsel %vm187, %v504, -inf
    %v509 = vsel %vm187, %v505, -inf
    %v510 = vsel %vm187, %v506, -inf
    %v511 = vmax.f32 %v507, %v508
    %v512 = vmax.f32 %v509, %v510
    %v513 = vmax.f32 %v511, %v512
    %v514 = vrot.slane %v513, 4
    %v515 = vmax.f32 %v513, %v514
    %v516 = vrot.slane %v515, 2
    %v517 = vmax.f32 %v515, %v516
    %v518 = vrot.slane %v517, 1
    %v519 = vmax.f32 %v517, %v518
    %520 = vset.pattern.permute.xlu0 1
    %521 = vperm.xlu0 %520, %v479
    %v522 = vpop.permute.xlu0 %521
    %524 = vset.pattern.permute.xlu0 1
    %525 = vperm.xlu0 %524, %v480
    %v526 = vpop.permute.xlu0 %525
    %528 = vset.pattern.permute.xlu0 1
    %529 = vperm.xlu0 %528, %v481
    %v530 = vpop.permute.xlu0 %529
    %532 = vset.pattern.permute.xlu0 1
    %533 = vperm.xlu0 %532, %v482
    %v534 = vpop.permute.xlu0 %533
    %v536 = vsel %vm80, %v522, -1e+30
    %v537 = vsel %vm81, %v526, -1e+30
    %v538 = vsel %vm82, %v530, -1e+30
    %v539 = vsel %vm83, %v534, -1e+30
    %v540 = vsel %vm187, %v536, -inf
    %v541 = vsel %vm187, %v537, -inf
    %v542 = vsel %vm187, %v538, -inf
    %v543 = vsel %vm187, %v539, -inf
    %v544 = vmax.f32 %v540, %v541
    %v545 = vmax.f32 %v542, %v543
    %v546 = vmax.f32 %v544, %v545
    %v547 = vrot.slane %v546, 4
    %v548 = vmax.f32 %v546, %v547
    %v549 = vrot.slane %v548, 2
    %v550 = vmax.f32 %v548, %v549
    %v551 = vrot.slane %v550, 1
    %v552 = vmax.f32 %v550, %v551
    %vm553 = vcmask 1040384
    %v554 = vsel %vm553, %v519, %v552
    %v555 = vpack.c.bf16 %v554, %v554
    %v557 = vsel %vm187, %v555, 0
    %559 = vmatprep.subr.bf16.mxu0 0
    %560 = vmatpush1.bf16.xpose.msra.mxu0 %v557
    %561 = vmatprep.subr.bf16.mxu0 0
    %562 = vmatpush1.bf16.xpose.msra.mxu0 0
    %563 = vmatprep.subr.bf16.mxu0 0
    %564 = vmatpush1.bf16.xpose.msra.mxu0 0
    %565 = vmatprep.subr.bf16.mxu0 0
    %566 = vmatpush1.bf16.xpose.msra.mxu0 0
    %567 = vmatprep.subr.bf16.mxu0 0
    %568 = vmatpush1.bf16.xpose.msra.mxu0 0
    %569 = vmatprep.subr.bf16.mxu0 0
    %570 = vmatpush1.bf16.xpose.msra.mxu0 0
    %571 = vmatprep.subr.bf16.mxu0 0
    %572 = vmatpush1.bf16.xpose.msra.mxu0 0
    %573 = vmatprep.subr.bf16.mxu0 0
    %574 = vmatpush1.bf16.xpose.msra.mxu0 0
    %575 = vmatprep.subr.bf16.mxu0 0
    %576 = vmatpush1.bf16.xpose.msra.mxu0 0
    %577 = vmatprep.subr.bf16.mxu0 0
    %578 = vmatpush1.bf16.xpose.msra.mxu0 0
    %579 = vmatprep.subr.bf16.mxu0 0
    %580 = vmatpush1.bf16.xpose.msra.mxu0 0
    %581 = vmatprep.subr.bf16.mxu0 0
    %582 = vmatpush1.bf16.xpose.msra.mxu0 0
    %583 = vmatprep.subr.bf16.mxu0 0
    %584 = vmatpush1.bf16.xpose.msra.mxu0 0
    %585 = vmatprep.subr.bf16.mxu0 0
    %586 = vmatpush1.bf16.xpose.msra.mxu0 0
    %587 = vmatprep.subr.bf16.mxu0 0
    %588 = vmatpush1.bf16.xpose.msra.mxu0 0
    %589 = vmatprep.subr.bf16.mxu0 0
    %590 = vmatpush1.bf16.xpose.msra.mxu0 0
    %591 = vmatprep.mubr.bf16.mxu0 0
    %592 = vmatmul.mubr.bf16.gmra.mrb[0].mxu0 %v335
    %v593 = vpop.f32.mrb[0].mxu0
    %v594 = vadd.f32 0.0, %v593
    %v595 = vpop.f32.mrb[0].mxu0
    %v596 = vpop.f32.mrb[0].mxu0
    %v597 = vadd.f32 0.0, %v596
    %v598 = vpop.f32.mrb[0].mxu0
    %599 = vmatprep.mubr.bf16.mxu0 0
    %600 = vmatmul.mubr.bf16.gmra.mrb[0].mxu0 %v338
    %v601 = vpop.f32.mrb[0].mxu0
    %v602 = vadd.f32 0.0, %v601
    %v603 = vpop.f32.mrb[0].mxu0
    %v604 = vpop.f32.mrb[0].mxu0
    %v605 = vadd.f32 0.0, %v604
    %v606 = vpop.f32.mrb[0].mxu0
    %607 = vdwg.mxu0
    %v608 = vsub.f32 %v479, %v594
    %v609 = vsub.f32 %v480, %v597
    %v610 = vsub.f32 %v481, %v602
    %v611 = vsub.f32 %v482, %v605
    %v612 = vmul.f32 %v608, 1.442695
    %v613 = vpow.pop %v612
    %v614 = vmul.f32 %v609, 1.442695
    %v615 = vpow.pop %v614
    %v616 = vmul.f32 %v610, 1.442695
    %v617 = vpow.pop %v616
    %v618 = vmul.f32 %v611, 1.442695
    %v619 = vpow.pop %v618
    %621 = vset.pattern.permute.xlu0 0
    %622 = vperm.xlu0 %621, %v613
    %v623 = vpop.permute.xlu0 %622
    %626 = vset.pattern.permute.xlu0 0
    %627 = vperm.xlu0 %626, %v615
    %v628 = vpop.permute.xlu0 %627
    %631 = vset.pattern.permute.xlu0 0
    %632 = vperm.xlu0 %631, %v617
    %v633 = vpop.permute.xlu0 %632
    %636 = vset.pattern.permute.xlu0 0
    %637 = vperm.xlu0 %636, %v619
    %v638 = vpop.permute.xlu0 %637
    %v640 = vmul.f32 %v233, %v623
    %v641 = vmul.f32 %v236, %v628
    %v642 = vmul.f32 %v241, %v633
    %v643 = vmul.f32 %v244, %v638
    %644 = vset.pattern.permute.xlu0 1
    %645 = vperm.xlu0 %644, %v613
    %v646 = vpop.permute.xlu0 %645
    %648 = vset.pattern.permute.xlu0 1
    %649 = vperm.xlu0 %648, %v615
    %v650 = vpop.permute.xlu0 %649
    %652 = vset.pattern.permute.xlu0 1
    %653 = vperm.xlu0 %652, %v617
    %v654 = vpop.permute.xlu0 %653
    %656 = vset.pattern.permute.xlu0 1
    %657 = vperm.xlu0 %656, %v619
    %v658 = vpop.permute.xlu0 %657
    %v660 = vmul.f32 %v233, %v646
    %v661 = vmul.f32 %v236, %v650
    %v662 = vmul.f32 %v241, %v654
    %v663 = vmul.f32 %v244, %v658
    %664 = vrot.lane.b32.xlu0 %v613, 64
    %v665 = vpop.permute.xlu0 %664
    %666 = vrot.lane.b32.xlu0 %v615, 64
    %v667 = vpop.permute.xlu0 %666
    %668 = vrot.lane.b32.xlu0 %v617, 64
    %v669 = vpop.permute.xlu0 %668
    %670 = vrot.lane.b32.xlu0 %v619, 64
    %v671 = vpop.permute.xlu0 %670
    %v676 = vsel %vm141, %v640, %v660
    %v677 = vsel %vm141, %v641, %v661
    %v678 = vsel %vm141, %v642, %v662
    %v679 = vsel %vm141, %v643, %v663
    %v680 = vsel %vm289, %v676, %v665
    %v681 = vsel %vm289, %v677, %v667
    %v682 = vsel %vm289, %v678, %v669
    %v683 = vsel %vm289, %v679, %v671
    %v684 = vpack.c.bf16 %v681, %v680
    %v685 = vpack.c.bf16 %v683, %v682
    %686 = vxpose.xlu0.c.b16.start [1/8] %v122, 128
    %687 = vxpose.xlu0.c.b16.cont [2/8] %v123, 128
    %688 = vxpose.xlu0.c.b16.cont [3/8] 0, 128
    %689 = vxpose.xlu0.c.b16.cont [4/8] 0, 128
    %690 = vxpose.xlu0.c.b16.cont [5/8] 0, 128
    %691 = vxpose.xlu0.c.b16.cont [6/8] 0, 128
    %692 = vxpose.xlu0.c.b16.cont [7/8] 0, 128
    %693 = vxpose.xlu0.c.b16.end [8/8] 0, 128
    %v694 = vpop.trf.xlu0
    %v695 = vpop.trf.xlu0
    %v696 = vpop.trf.xlu0
    %v697 = vpop.trf.xlu0
    %v698 = vpop.trf.xlu0
    %v699 = vpop.trf.xlu0
    %v700 = vpop.trf.xlu0
    %v701 = vpop.trf.xlu0
    %v703 = vsel %vm141, %v694, 0
    %705 = vmatprep.subr.bf16.mxu0 0
    %706 = vmatpush1.bf16.msra.mxu0 %v684
    %707 = vmatprep.subr.bf16.mxu0 0
    %708 = vmatpush1.bf16.msra.mxu0 %v685
    %709 = vmatprep.subr.bf16.mxu0 0
    %710 = vmatpush1.bf16.msra.mxu0 0
    %711 = vmatprep.subr.bf16.mxu0 0
    %712 = vmatpush1.bf16.msra.mxu0 0
    %713 = vmatprep.subr.bf16.mxu0 0
    %714 = vmatpush1.bf16.msra.mxu0 0
    %715 = vmatprep.subr.bf16.mxu0 0
    %716 = vmatpush1.bf16.msra.mxu0 0
    %717 = vmatprep.subr.bf16.mxu0 0
    %718 = vmatpush1.bf16.msra.mxu0 0
    %719 = vmatprep.subr.bf16.mxu0 0
    %720 = vmatpush1.bf16.msra.mxu0 0
    %721 = vmatprep.subr.bf16.mxu0 0
    %722 = vmatpush1.bf16.msra.mxu0 0
    %723 = vmatprep.subr.bf16.mxu0 0
    %724 = vmatpush1.bf16.msra.mxu0 0
    %725 = vmatprep.subr.bf16.mxu0 0
    %726 = vmatpush1.bf16.msra.mxu0 0
    %727 = vmatprep.subr.bf16.mxu0 0
    %728 = vmatpush1.bf16.msra.mxu0 0
    %729 = vmatprep.subr.bf16.mxu0 0
    %730 = vmatpush1.bf16.msra.mxu0 0
    %731 = vmatprep.subr.bf16.mxu0 0
    %732 = vmatpush1.bf16.msra.mxu0 0
    %733 = vmatprep.subr.bf16.mxu0 0
    %734 = vmatpush1.bf16.msra.mxu0 0
    %735 = vmatprep.subr.bf16.mxu0 0
    %736 = vmatpush1.bf16.msra.mxu0 0
    %737 = vmatprep.mubr.bf16.mxu0 0
    %738 = vmatmul.mubr.bf16.gmra.mrb[0].mxu0 %v703
    %v739 = vpop.f32.mrb[0].mxu0
    %v740 = vadd.f32 0.0, %v739
    %v741 = vpop.f32.mrb[0].mxu0
    %v742 = vpop.f32.mrb[0].mxu0
    %v743 = vadd.f32 0.0, %v742
    %v744 = vpop.f32.mrb[0].mxu0
    %745 = vdwg.mxu0
    %v746 = vld [vmem:[%s9] sm:$0x1]
    %v747 = vadd.f32 %v740, 1e-16
    %v748 = vadd.f32 %v743, 1e-16
    %750 = vset.pattern.permute.xlu0 64
    %751 = vperm.xlu0 %750, %v747
    %v752 = vpop.permute.xlu0 %751
    %755 = vset.pattern.permute.xlu0 64
    %756 = vperm.xlu0 %755, %v748
    %v757 = vpop.permute.xlu0 %756
    %v759 = vrcp.pop %v752
    %v760 = vmul.f32 %v740, %v759
    %v761 = vrcp.pop %v757
    %v762 = vmul.f32 %v743, %v761
    %v764 = vlaneseq
    %v765 = vshrl.u32 %v764, 7
    %v766 = vsub.s32 0, %v765
    %v767 = vrot.slane %v746, %v766
    %v769 = vadd.f32 %v760, %v767
    %v770 = vadd.f32 %v762, %v767
    %v771 = vadd.f32 %v769, %v60
    %v772 = vadd.f32 %v770, %v61
    %v773 = vsel %vm141, %v771, 0.0
    %774 = vadd.xlane.f32.xlu0 %v773
    %v775 = vpop.xlane.xlu0 %774
    %vm776 = vcmask 257024
    %v777 = vsel %vm776, %v772, 0.0
    %778 = vadd.xlane.f32.xlu0 %v777
    %v779 = vpop.xlane.xlu0 %778
    %v780 = vrcp.pop 32.0
    %v781 = vmul.f32 %v775, %v780
    %v782 = vmul.f32 %v779, %v780
    %v783 = vsub.f32 %v771, %v781
    %v784 = vsub.f32 %v772, %v782
    %v785 = vmul.f32 %v783, %v783
    %v786 = vmul.f32 %v784, %v784
    %v787 = vsel %vm141, %v785, 0.0
    %788 = vadd.xlane.f32.xlu0 %v787
    %v789 = vpop.xlane.xlu0 %788
    %v790 = vsel %vm776, %v786, 0.0
    %791 = vadd.xlane.f32.xlu0 %v790
    %v792 = vpop.xlane.xlu0 %791
    %v793 = vmul.f32 %v789, %v780
    %v794 = vmul.f32 %v792, %v780
    %v795 = vadd.f32 %v793, 1e-05
    %v796 = vadd.f32 %v794, 1e-05
    %v797 = vrsqrt.pop %v795
    %v798 = vrsqrt.pop %v796
    %v799 = vmul.f32 %v783, %v797
    %v800 = vmul.f32 %v784, %v798
    %801 = vset.pattern.permute.xlu0 65
    %802 = vperm.xlu0 %801, %v747
    %v803 = vpop.permute.xlu0 %802
    %805 = vset.pattern.permute.xlu0 65
    %806 = vperm.xlu0 %805, %v748
    %v807 = vpop.permute.xlu0 %806
    %v809 = vrcp.pop %v803
    %v810 = vmul.f32 %v740, %v809
    %v811 = vrcp.pop %v807
    %v812 = vmul.f32 %v743, %v811
    %v813 = vadd.f32 %v810, %v767
    %v814 = vadd.f32 %v812, %v767
    %817 = vrot.lane.b32.xlu0 %v60, 32
    %v818 = vpop.permute.xlu0 %817
    %819 = vrot.lane.b32.xlu0 %v61, 32
    %v820 = vpop.permute.xlu0 %819
    %v823 = vadd.f32 %v813, %v818
    %v824 = vadd.f32 %v814, %v820
    %827 = vrot.lane.b32.xlu0 %v823, 96
    %v828 = vpop.permute.xlu0 %827
    %829 = vrot.lane.b32.xlu0 %v824, 96
    %v830 = vpop.permute.xlu0 %829
    %v833 = vsel %vm141, %v828, 0.0
    %834 = vadd.xlane.f32.xlu0 %v833
    %v835 = vpop.xlane.xlu0 %834
    %v836 = vsel %vm776, %v830, 0.0
    %837 = vadd.xlane.f32.xlu0 %v836
    %v838 = vpop.xlane.xlu0 %837
    %v839 = vmul.f32 %v835, %v780
    %v840 = vmul.f32 %v838, %v780
    %v841 = vsub.f32 %v823, %v839
    %v842 = vsub.f32 %v824, %v840
    %v843 = vmul.f32 %v841, %v841
    %v844 = vmul.f32 %v842, %v842
    %847 = vrot.lane.b32.xlu0 %v843, 96
    %v848 = vpop.permute.xlu0 %847
    %849 = vrot.lane.b32.xlu0 %v844, 96
    %v850 = vpop.permute.xlu0 %849
    %v853 = vsel %vm141, %v848, 0.0
    %854 = vadd.xlane.f32.xlu0 %v853
    %v855 = vpop.xlane.xlu0 %854
    %v856 = vsel %vm776, %v850, 0.0
    %857 = vadd.xlane.f32.xlu0 %v856
    %v858 = vpop.xlane.xlu0 %857
    %v859 = vmul.f32 %v855, %v780
    %v860 = vmul.f32 %v858, %v780
    %v861 = vadd.f32 %v859, 1e-05
    %v862 = vadd.f32 %v860, 1e-05
    %v863 = vrsqrt.pop %v861
    %v864 = vrsqrt.pop %v862
    %v865 = vmul.f32 %v841, %v863
    %v866 = vmul.f32 %v842, %v864
    %v867 = vsel %vm141, %v799, %v865
    %v868 = vsel %vm141, %v800, %v866
    %v869 = vld [vmem:[%s10] sm:$0xf]
    %v870 = vld [vmem:[%s10 + $0x4] sm:$0xf]
    %v871 = vld [vmem:[%s10 + $0x8] sm:$0xf]
    %v872 = vld [vmem:[%s10 + $0xc] sm:$0xf]
    %v873 = vld [vmem:[%s10 + $0x10] sm:$0xf]
    %v874 = vld [vmem:[%s10 + $0x14] sm:$0xf]
    %v875 = vld [vmem:[%s10 + $0x18] sm:$0xf]
    %v876 = vld [vmem:[%s10 + $0x1c] sm:$0xf]
    %v877 = vpack.c.bf16 %v868, %v867
    %v878 = vld [vmem:[%s11] sm:$0x1]
    %v880 = vlaneseq
    %v881 = vshrl.u32 %v880, 7
    %v882 = vsub.s32 0, %v881
    %v883 = vrot.slane %v878, %v882
    %v893 = vunpack.c.l.b16 %v869
    %v894 = vunpack.c.l.b16 %v870
    %v895 = vunpack.c.l.b16 %v871
    %v896 = vunpack.c.l.b16 %v872
    %v897 = vunpack.c.l.b16 %v873
    %v898 = vunpack.c.l.b16 %v874
    %v899 = vunpack.c.l.b16 %v875
    %v900 = vunpack.c.l.b16 %v876
    %v901 = vpack.c.b16 %v894, %v893
    %v902 = vpack.c.b16 %v896, %v895
    %v903 = vpack.c.b16 %v898, %v897
    %v904 = vpack.c.b16 %v900, %v899
    %v910 = vsel %vm289, %v877, 0
    %912 = vmatprep.subr.bf16.mxu0 0
    %913 = vmatpush1.bf16.msra.mxu0 %v901
    %914 = vmatprep.subr.bf16.mxu0 0
    %915 = vmatpush1.bf16.msra.mxu0 %v902
    %916 = vmatprep.subr.bf16.mxu0 0
    %917 = vmatpush1.bf16.msra.mxu0 %v903
    %918 = vmatprep.subr.bf16.mxu0 0
    %919 = vmatpush1.bf16.msra.mxu0 %v904
    %920 = vmatprep.subr.bf16.mxu0 0
    %921 = vmatpush1.bf16.msra.mxu0 0
    %922 = vmatprep.subr.bf16.mxu0 0
    %923 = vmatpush1.bf16.msra.mxu0 0
    %924 = vmatprep.subr.bf16.mxu0 0
    %925 = vmatpush1.bf16.msra.mxu0 0
    %926 = vmatprep.subr.bf16.mxu0 0
    %927 = vmatpush1.bf16.msra.mxu0 0
    %928 = vmatprep.subr.bf16.mxu0 0
    %929 = vmatpush1.bf16.msra.mxu0 0
    %930 = vmatprep.subr.bf16.mxu0 0
    %931 = vmatpush1.bf16.msra.mxu0 0
    %932 = vmatprep.subr.bf16.mxu0 0
    %933 = vmatpush1.bf16.msra.mxu0 0
    %934 = vmatprep.subr.bf16.mxu0 0
    %935 = vmatpush1.bf16.msra.mxu0 0
    %936 = vmatprep.subr.bf16.mxu0 0
    %937 = vmatpush1.bf16.msra.mxu0 0
    %938 = vmatprep.subr.bf16.mxu0 0
    %939 = vmatpush1.bf16.msra.mxu0 0
    %940 = vmatprep.subr.bf16.mxu0 0
    %941 = vmatpush1.bf16.msra.mxu0 0
    %942 = vmatprep.subr.bf16.mxu0 0
    %943 = vmatpush1.bf16.msra.mxu0 0
    %944 = vmatprep.mubr.bf16.mxu0 0
    %945 = vmatmul.mubr.bf16.gmra.mrb[0].mxu0 %v910
    %v946 = vpop.f32.mrb[0].mxu0
    %v947 = vadd.f32 %v883, %v946
    %v948 = vpop.f32.mrb[0].mxu0
    %v949 = vpop.f32.mrb[0].mxu0
    %v950 = vadd.f32 %v883, %v949
    %v951 = vpop.f32.mrb[0].mxu0
    %952 = vdwg.mxu0
    %v953 = vsub.f32 0.0, %v947
    %v954 = vsub.f32 0.0, %v950
    %v955 = vmul.f32 %v953, 1.442695
    %v956 = vpow.pop %v955
    %v957 = vmul.f32 %v954, 1.442695
    %v958 = vpow.pop %v957
    %v959 = vadd.f32 %v956, 1.0
    %v960 = vadd.f32 %v958, 1.0
    %v961 = vrcp.pop %v959
    %v962 = vrcp.pop %v960
    %v963 = vmul.f32 %v947, %v961
    %v964 = vmul.f32 %v950, %v962
    %965 = vst.msk [vmem:[#allocation2] sm:$0xff] %vm141, %v963
    %966 = vst.msk [vmem:[#allocation2 + $0x8] sm:$0xf] %vm776, %v964
    %v967 = vld [vmem:[%s4] sm:$0xff]
    %v968 = vld [vmem:[%s4 + $0x8] sm:$0xff]
    %v969 = vld [vmem:[%s4 + $0x10] sm:$0xff]
    %v970 = vld [vmem:[%s4 + $0x18] sm:$0xff]
    %v971 = vld [vmem:[%s4 + $0x20] sm:$0xff]
    %v972 = vld [vmem:[%s4 + $0x28] sm:$0xff]
    %v973 = vld [vmem:[%s4 + $0x30] sm:$0xff]
    %v974 = vld [vmem:[%s4 + $0x38] sm:$0xff]
    %975 = vset.pattern.permute.xlu0 0
    %976 = vperm.xlu0 %975, %v967
    %v977 = vpop.permute.xlu0 %976
    %978 = vset.pattern.permute.xlu0 0
    %979 = vperm.xlu0 %978, %v968
    %v980 = vpop.permute.xlu0 %979
    %981 = vset.pattern.permute.xlu0 0
    %982 = vperm.xlu0 %981, %v969
    %v983 = vpop.permute.xlu0 %982
    %984 = vset.pattern.permute.xlu0 0
    %985 = vperm.xlu0 %984, %v970
    %v986 = vpop.permute.xlu0 %985
    %987 = vset.pattern.permute.xlu0 0
    %988 = vperm.xlu0 %987, %v971
    %v989 = vpop.permute.xlu0 %988
    %990 = vset.pattern.permute.xlu0 0
    %991 = vperm.xlu0 %990, %v972
    %v992 = vpop.permute.xlu0 %991
    %993 = vset.pattern.permute.xlu0 0
    %994 = vperm.xlu0 %993, %v973
    %v995 = vpop.permute.xlu0 %994
    %996 = vset.pattern.permute.xlu0 0
    %997 = vperm.xlu0 %996, %v974
    %v998 = vpop.permute.xlu0 %997
    %vm999 = vcmp.eq.s32.totalorder %v63, %v977
    %vm1000 = vcmp.eq.s32.totalorder %v63, %v980
    %vm1001 = vcmp.eq.s32.totalorder %v63, %v983
    %vm1002 = vcmp.eq.s32.totalorder %v63, %v986
    %vm1003 = vcmp.eq.s32.totalorder %v63, %v989
    %vm1004 = vcmp.eq.s32.totalorder %v63, %v992
    %vm1005 = vcmp.eq.s32.totalorder %v63, %v995
    %vm1006 = vcmp.eq.s32.totalorder %v63, %v998
    %v1007 = vld [vmem:[%s5] sm:$0xff]
    %v1008 = vld [vmem:[%s5 + $0x8] sm:$0xff]
    %v1009 = vld [vmem:[%s5 + $0x10] sm:$0xff]
    %v1010 = vld [vmem:[%s5 + $0x18] sm:$0xff]
    %v1011 = vld [vmem:[%s5 + $0x20] sm:$0xff]
    %v1012 = vld [vmem:[%s5 + $0x28] sm:$0xff]
    %v1013 = vld [vmem:[%s5 + $0x30] sm:$0xff]
    %v1014 = vld [vmem:[%s5 + $0x38] sm:$0xff]
    %v1015 = vadd.s32 %v1007, 12
    %v1016 = vadd.s32 %v1008, 12
    %v1017 = vadd.s32 %v1009, 12
    %v1018 = vadd.s32 %v1010, 12
    %v1019 = vadd.s32 %v1011, 12
    %v1020 = vadd.s32 %v1012, 12
    %v1021 = vadd.s32 %v1013, 12
    %v1022 = vadd.s32 %v1014, 12
    %1023 = vset.pattern.permute.xlu0 0
    %1024 = vperm.xlu0 %1023, %v1015
    %v1025 = vpop.permute.xlu0 %1024
    %1026 = vset.pattern.permute.xlu0 0
    %1027 = vperm.xlu0 %1026, %v1016
    %v1028 = vpop.permute.xlu0 %1027
    %1029 = vset.pattern.permute.xlu0 0
    %1030 = vperm.xlu0 %1029, %v1017
    %v1031 = vpop.permute.xlu0 %1030
    %1032 = vset.pattern.permute.xlu0 0
    %1033 = vperm.xlu0 %1032, %v1018
    %v1034 = vpop.permute.xlu0 %1033
    %1035 = vset.pattern.permute.xlu0 0
    %1036 = vperm.xlu0 %1035, %v1019
    %v1037 = vpop.permute.xlu0 %1036
    %1038 = vset.pattern.permute.xlu0 0
    %1039 = vperm.xlu0 %1038, %v1020
    %v1040 = vpop.permute.xlu0 %1039
    %1041 = vset.pattern.permute.xlu0 0
    %1042 = vperm.xlu0 %1041, %v1021
    %v1043 = vpop.permute.xlu0 %1042
    %1044 = vset.pattern.permute.xlu0 0
    %1045 = vperm.xlu0 %1044, %v1022
    %v1046 = vpop.permute.xlu0 %1045
    %vm1047 = vcmp.eq.s32.totalorder %v63, %v1025
    %vm1048 = vcmp.eq.s32.totalorder %v63, %v1028
    %vm1049 = vcmp.eq.s32.totalorder %v63, %v1031
    %vm1050 = vcmp.eq.s32.totalorder %v63, %v1034
    %vm1051 = vcmp.eq.s32.totalorder %v63, %v1037
    %vm1052 = vcmp.eq.s32.totalorder %v63, %v1040
    %vm1053 = vcmp.eq.s32.totalorder %v63, %v1043
    %vm1054 = vcmp.eq.s32.totalorder %v63, %v1046
    %vm1055 = vmor %vm999, %vm1047
    %vm1056 = vmor %vm1000, %vm1048
    %vm1057 = vmor %vm1001, %vm1049
    %vm1058 = vmor %vm1002, %vm1050
    %vm1059 = vmor %vm1003, %vm1051
    %vm1060 = vmor %vm1004, %vm1052
    %vm1061 = vmor %vm1005, %vm1053
    %vm1062 = vmor %vm1006, %vm1054
    %v1063 = vsel %vm1055, 1, 0
    %v1064 = vsel %vm1056, 1, 0
    %v1065 = vsel %vm1057, 1, 0
    %v1066 = vsel %vm1058, 1, 0
    %v1067 = vsel %vm1059, 1, 0
    %v1068 = vsel %vm1060, 1, 0
    %v1069 = vsel %vm1061, 1, 0
    %v1070 = vsel %vm1062, 1, 0
    %v1071 = vcvt.s32.f32 %v1063
    %v1072 = vcvt.s32.f32 %v1064
    %v1073 = vcvt.s32.f32 %v1065
    %v1074 = vcvt.s32.f32 %v1066
    %v1075 = vcvt.s32.f32 %v1067
    %v1076 = vcvt.s32.f32 %v1068
    %v1077 = vcvt.s32.f32 %v1069
    %v1078 = vcvt.s32.f32 %v1070
    %v1079 = vpack.c.bf16 %v1072, %v1071
    %v1080 = vpack.c.bf16 %v1074, %v1073
    %v1081 = vpack.c.bf16 %v1076, %v1075
    %v1082 = vpack.c.bf16 %v1078, %v1077
    %v1083 = vld [vmem:[%s1] sm:$0xff]
    %v1084 = vld [vmem:[%s1 + $0x8] sm:$0xff]
    %v1085 = vld [vmem:[%s1 + $0x10] sm:$0xff]
    %v1086 = vld [vmem:[%s1 + $0x18] sm:$0xff]
    %v1087 = vld [vmem:[%s1 + $0x20] sm:$0xff]
    %v1088 = vld [vmem:[%s1 + $0x28] sm:$0xff]
    %v1089 = vld [vmem:[%s1 + $0x30] sm:$0xff]
    %v1090 = vld [vmem:[%s1 + $0x38] sm:$0xff]
    %v1091 = vld [vmem:[%s12] sm:$0xf]
    %v1092 = vld [vmem:[%s12 + $0x4] sm:$0xf]
    %v1093 = vpack.c.bf16 %v1084, %v1083
    %v1094 = vpack.c.bf16 %v1086, %v1085
    %v1095 = vpack.c.bf16 %v1088, %v1087
    %v1096 = vpack.c.bf16 %v1090, %v1089
    %v1097 = vld [vmem:[%s13] sm:$0x1]
    %v1099 = vlaneseq
    %v1100 = vshrl.u32 %v1099, 7
    %v1101 = vsub.s32 0, %v1100
    %v1102 = vrot.slane %v1097, %v1101
    %v1106 = vunpack.c.l.b16 %v1091
    %v1107 = vunpack.c.l.b16 %v1092
    %v1108 = vpack.c.b16 %v1107, %v1106
    %vm1110 = vcmask 130048
    %v1112 = vsel %vm1110, %v1093, 0
    %v1115 = vsel %vm1110, %v1094, 0
    %v1118 = vsel %vm1110, %v1095, 0
    %v1121 = vsel %vm1110, %v1096, 0
    %1123 = vmatprep.subr.bf16.mxu0 0
    %1124 = vmatpush1.bf16.msra.mxu0 %v1108
    %1125 = vmatprep.subr.bf16.mxu0 0
    %1126 = vmatpush1.bf16.msra.mxu0 0
    %1127 = vmatprep.subr.bf16.mxu0 0
    %1128 = vmatpush1.bf16.msra.mxu0 0
    %1129 = vmatprep.subr.bf16.mxu0 0
    %1130 = vmatpush1.bf16.msra.mxu0 0
    %1131 = vmatprep.subr.bf16.mxu0 0
    %1132 = vmatpush1.bf16.msra.mxu0 0
    %1133 = vmatprep.subr.bf16.mxu0 0
    %1134 = vmatpush1.bf16.msra.mxu0 0
    %1135 = vmatprep.subr.bf16.mxu0 0
    %1136 = vmatpush1.bf16.msra.mxu0 0
    %1137 = vmatprep.subr.bf16.mxu0 0
    %1138 = vmatpush1.bf16.msra.mxu0 0
    %1139 = vmatprep.subr.bf16.mxu0 0
    %1140 = vmatpush1.bf16.msra.mxu0 0
    %1141 = vmatprep.subr.bf16.mxu0 0
    %1142 = vmatpush1.bf16.msra.mxu0 0
    %1143 = vmatprep.subr.bf16.mxu0 0
    %1144 = vmatpush1.bf16.msra.mxu0 0
    %1145 = vmatprep.subr.bf16.mxu0 0
    %1146 = vmatpush1.bf16.msra.mxu0 0
    %1147 = vmatprep.subr.bf16.mxu0 0
    %1148 = vmatpush1.bf16.msra.mxu0 0
    %1149 = vmatprep.subr.bf16.mxu0 0
    %1150 = vmatpush1.bf16.msra.mxu0 0
    %1151 = vmatprep.subr.bf16.mxu0 0
    %1152 = vmatpush1.bf16.msra.mxu0 0
    %1153 = vmatprep.subr.bf16.mxu0 0
    %1154 = vmatpush1.bf16.msra.mxu0 0
    %1155 = vmatprep.mubr.bf16.mxu0 0
    %1156 = vmatmul.mubr.bf16.gmra.mrb[0].mxu0 %v1112
    %v1157 = vpop.f32.mrb[0].mxu0
    %v1158 = vadd.f32 %v1102, %v1157
    %v1159 = vpop.f32.mrb[0].mxu0
    %v1160 = vpop.f32.mrb[0].mxu0
    %v1161 = vadd.f32 %v1102, %v1160
    %v1162 = vpop.f32.mrb[0].mxu0
    %1163 = vmatprep.mubr.bf16.mxu0 0
    %1164 = vmatmul.mubr.bf16.gmra.mrb[0].mxu0 %v1115
    %v1165 = vpop.f32.mrb[0].mxu0
    %v1166 = vadd.f32 %v1102, %v1165
    %v1167 = vpop.f32.mrb[0].mxu0
    %v1168 = vpop.f32.mrb[0].mxu0
    %v1169 = vadd.f32 %v1102, %v1168
    %v1170 = vpop.f32.mrb[0].mxu0
    %1171 = vmatprep.mubr.bf16.mxu0 0
    %1172 = vmatmul.mubr.bf16.gmra.mrb[0].mxu0 %v1118
    %v1173 = vpop.f32.mrb[0].mxu0
    %v1174 = vadd.f32 %v1102, %v1173
    %v1175 = vpop.f32.mrb[0].mxu0
    %v1176 = vpop.f32.mrb[0].mxu0
    %v1177 = vadd.f32 %v1102, %v1176
    %v1178 = vpop.f32.mrb[0].mxu0
    %1179 = vmatprep.mubr.bf16.mxu0 0
    %1180 = vmatmul.mubr.bf16.gmra.mrb[0].mxu0 %v1121
    %v1181 = vpop.f32.mrb[0].mxu0
    %v1182 = vadd.f32 %v1102, %v1181
    %v1183 = vpop.f32.mrb[0].mxu0
    %v1184 = vpop.f32.mrb[0].mxu0
    %v1185 = vadd.f32 %v1102, %v1184
    %v1186 = vpop.f32.mrb[0].mxu0
    %1187 = vdwg.mxu0
    %v1188 = vsub.f32 0.0, %v1158
    %v1189 = vsub.f32 0.0, %v1161
    %v1190 = vsub.f32 0.0, %v1166
    %v1191 = vsub.f32 0.0, %v1169
    %v1192 = vsub.f32 0.0, %v1174
    %v1193 = vsub.f32 0.0, %v1177
    %v1194 = vsub.f32 0.0, %v1182
    %v1195 = vsub.f32 0.0, %v1185
    %v1196 = vmul.f32 %v1188, 1.442695
    %v1197 = vpow.pop %v1196
    %v1198 = vmul.f32 %v1189, 1.442695
    %v1199 = vpow.pop %v1198
    %v1200 = vmul.f32 %v1190, 1.442695
    %v1201 = vpow.pop %v1200
    %v1202 = vmul.f32 %v1191, 1.442695
    %v1203 = vpow.pop %v1202
    %v1204 = vmul.f32 %v1192, 1.442695
    %v1205 = vpow.pop %v1204
    %v1206 = vmul.f32 %v1193, 1.442695
    %v1207 = vpow.pop %v1206
    %v1208 = vmul.f32 %v1194, 1.442695
    %v1209 = vpow.pop %v1208
    %v1210 = vmul.f32 %v1195, 1.442695
    %v1211 = vpow.pop %v1210
    %v1212 = vadd.f32 %v1197, 1.0
    %v1213 = vadd.f32 %v1199, 1.0
    %v1214 = vadd.f32 %v1201, 1.0
    %v1215 = vadd.f32 %v1203, 1.0
    %v1216 = vadd.f32 %v1205, 1.0
    %v1217 = vadd.f32 %v1207, 1.0
    %v1218 = vadd.f32 %v1209, 1.0
    %v1219 = vadd.f32 %v1211, 1.0
    %v1220 = vrcp.pop %v1212
    %v1221 = vrcp.pop %v1213
    %v1222 = vrcp.pop %v1214
    %v1223 = vrcp.pop %v1215
    %v1224 = vrcp.pop %v1216
    %v1225 = vrcp.pop %v1217
    %v1226 = vrcp.pop %v1218
    %v1227 = vrcp.pop %v1219
    %v1228 = vmul.f32 %v1158, %v1220
    %v1229 = vmul.f32 %v1161, %v1221
    %v1230 = vmul.f32 %v1166, %v1222
    %v1231 = vmul.f32 %v1169, %v1223
    %v1232 = vmul.f32 %v1174, %v1224
    %v1233 = vmul.f32 %v1177, %v1225
    %v1234 = vmul.f32 %v1182, %v1226
    %v1235 = vmul.f32 %v1185, %v1227
    %v1236 = vld [vmem:[%s14] sm:$0xf]
    %v1237 = vld [vmem:[%s14 + $0x4] sm:$0xf]
    %v1238 = vld [vmem:[%s14 + $0x8] sm:$0xf]
    %v1239 = vld [vmem:[%s14 + $0xc] sm:$0xf]
    %v1240 = vpack.c.bf16 %v964, %v963
    %v1245 = vunpack.c.l.b16 %v1236
    %v1246 = vunpack.c.l.b16 %v1237
    %v1247 = vunpack.c.l.b16 %v1238
    %v1248 = vunpack.c.l.b16 %v1239
    %v1249 = vpack.c.b16 %v1246, %v1245
    %v1250 = vpack.c.b16 %v1248, %v1247
    %v1254 = vsel %vm141, %v1240, 0
    %1256 = vmatprep.subr.bf16.mxu0 0
    %1257 = vmatpush1.bf16.msra.mxu0 %v1249
    %1258 = vmatprep.subr.bf16.mxu0 0
    %1259 = vmatpush1.bf16.msra.mxu0 %v1250
    %1260 = vmatprep.subr.bf16.mxu0 0
    %1261 = vmatpush1.bf16.msra.mxu0 0
    %1262 = vmatprep.subr.bf16.mxu0 0
    %1263 = vmatpush1.bf16.msra.mxu0 0
    %1264 = vmatprep.subr.bf16.mxu0 0
    %1265 = vmatpush1.bf16.msra.mxu0 0
    %1266 = vmatprep.subr.bf16.mxu0 0
    %1267 = vmatpush1.bf16.msra.mxu0 0
    %1268 = vmatprep.subr.bf16.mxu0 0
    %1269 = vmatpush1.bf16.msra.mxu0 0
    %1270 = vmatprep.subr.bf16.mxu0 0
    %1271 = vmatpush1.bf16.msra.mxu0 0
    %1272 = vmatprep.subr.bf16.mxu0 0
    %1273 = vmatpush1.bf16.msra.mxu0 0
    %1274 = vmatprep.subr.bf16.mxu0 0
    %1275 = vmatpush1.bf16.msra.mxu0 0
    %1276 = vmatprep.subr.bf16.mxu0 0
    %1277 = vmatpush1.bf16.msra.mxu0 0
    %1278 = vmatprep.subr.bf16.mxu0 0
    %1279 = vmatpush1.bf16.msra.mxu0 0
    %1280 = vmatprep.subr.bf16.mxu0 0
    %1281 = vmatpush1.bf16.msra.mxu0 0
    %1282 = vmatprep.subr.bf16.mxu0 0
    %1283 = vmatpush1.bf16.msra.mxu0 0
    %1284 = vmatprep.subr.bf16.mxu0 0
    %1285 = vmatpush1.bf16.msra.mxu0 0
    %1286 = vmatprep.subr.bf16.mxu0 0
    %1287 = vmatpush1.bf16.msra.mxu0 0
    %1288 = vmatprep.mubr.bf16.mxu0 0
    %1289 = vmatmul.mubr.bf16.gmra.mrb[0].mxu0 %v1254
    %v1290 = vpop.f32.mrb[0].mxu0
    %v1291 = vadd.f32 0.0, %v1290
    %v1292 = vpop.f32.mrb[0].mxu0
    %v1293 = vpop.f32.mrb[0].mxu0
    %v1294 = vadd.f32 0.0, %v1293
    %v1295 = vpop.f32.mrb[0].mxu0
    %1296 = vdwg.mxu0
    %vm1299 = vcmask 1043456
    %v1300 = vrot.slane %v1291, 4
    %v1301 = vrot.slane %v1294, 4
    %v1302 = vsel %vm1299, %v1300, %v1301
    %1303 = vrot.lane.b32.xlu0 %v1300, 112
    %v1304 = vpop.permute.xlu0 %1303
    %1305 = vrot.lane.b32.xlu0 %v1302, 112
    %v1306 = vpop.permute.xlu0 %1305
    %v1309 = vsel %vm1299, %v1294, %v1304
    %v1310 = vpack.c.bf16 %v1309, %v1291
    %v1311 = vpack.c.bf16 %v1306, %v1306
    %v1312 = vld [vmem:[%s15] sm:$0xf]
    %v1313 = vld [vmem:[%s15 + $0x4] sm:$0xf]
    %v1314 = vld [vmem:[%s15 + $0x8] sm:$0xf]
    %v1315 = vld [vmem:[%s15 + $0xc] sm:$0xf]
    %v1316 = vpack.c.bf16 %v1229, %v1228
    %v1317 = vpack.c.bf16 %v1231, %v1230
    %v1318 = vpack.c.bf16 %v1233, %v1232
    %v1319 = vpack.c.bf16 %v1235, %v1234
    %v1324 = vunpack.c.l.b16 %v1312
    %v1325 = vunpack.c.l.b16 %v1313
    %v1326 = vunpack.c.l.b16 %v1314
    %v1327 = vunpack.c.l.b16 %v1315
    %v1328 = vpack.c.b16 %v1325, %v1324
    %v1329 = vpack.c.b16 %v1327, %v1326
    %v1333 = vsel %vm141, %v1316, 0
    %v1336 = vsel %vm141, %v1317, 0
    %v1339 = vsel %vm141, %v1318, 0
    %v1342 = vsel %vm141, %v1319, 0
    %1344 = vmatprep.subr.bf16.mxu0 0
    %1345 = vmatpush1.bf16.msra.mxu0 %v1328
    %1346 = vmatprep.subr.bf16.mxu0 0
    %1347 = vmatpush1.bf16.msra.mxu0 %v1329
    %1348 = vmatprep.subr.bf16.mxu0 0
    %1349 = vmatpush1.bf16.msra.mxu0 0
    %1350 = vmatprep.subr.bf16.mxu0 0
    %1351 = vmatpush1.bf16.msra.mxu0 0
    %1352 = vmatprep.subr.bf16.mxu0 0
    %1353 = vmatpush1.bf16.msra.mxu0 0
    %1354 = vmatprep.subr.bf16.mxu0 0
    %1355 = vmatpush1.bf16.msra.mxu0 0
    %1356 = vmatprep.subr.bf16.mxu0 0
    %1357 = vmatpush1.bf16.msra.mxu0 0
    %1358 = vmatprep.subr.bf16.mxu0 0
    %1359 = vmatpush1.bf16.msra.mxu0 0
    %1360 = vmatprep.subr.bf16.mxu0 0
    %1361 = vmatpush1.bf16.msra.mxu0 0
    %1362 = vmatprep.subr.bf16.mxu0 0
    %1363 = vmatpush1.bf16.msra.mxu0 0
    %1364 = vmatprep.subr.bf16.mxu0 0
    %1365 = vmatpush1.bf16.msra.mxu0 0
    %1366 = vmatprep.subr.bf16.mxu0 0
    %1367 = vmatpush1.bf16.msra.mxu0 0
    %1368 = vmatprep.subr.bf16.mxu0 0
    %1369 = vmatpush1.bf16.msra.mxu0 0
    %1370 = vmatprep.subr.bf16.mxu0 0
    %1371 = vmatpush1.bf16.msra.mxu0 0
    %1372 = vmatprep.subr.bf16.mxu0 0
    %1373 = vmatpush1.bf16.msra.mxu0 0
    %1374 = vmatprep.subr.bf16.mxu0 0
    %1375 = vmatpush1.bf16.msra.mxu0 0
    %1376 = vmatprep.mubr.bf16.mxu0 0
    %1377 = vmatmul.mubr.bf16.gmra.mrb[0].mxu0 %v1333
    %v1378 = vpop.f32.mrb[0].mxu0
    %v1379 = vadd.f32 0.0, %v1378
    %v1380 = vpop.f32.mrb[0].mxu0
    %v1381 = vpop.f32.mrb[0].mxu0
    %v1382 = vadd.f32 0.0, %v1381
    %v1383 = vpop.f32.mrb[0].mxu0
    %1384 = vmatprep.mubr.bf16.mxu0 0
    %1385 = vmatmul.mubr.bf16.gmra.mrb[0].mxu0 %v1336
    %v1386 = vpop.f32.mrb[0].mxu0
    %v1387 = vadd.f32 0.0, %v1386
    %v1388 = vpop.f32.mrb[0].mxu0
    %v1389 = vpop.f32.mrb[0].mxu0
    %v1390 = vadd.f32 0.0, %v1389
    %v1391 = vpop.f32.mrb[0].mxu0
    %1392 = vmatprep.mubr.bf16.mxu0 0
    %1393 = vmatmul.mubr.bf16.gmra.mrb[0].mxu0 %v1339
    %v1394 = vpop.f32.mrb[0].mxu0
    %v1395 = vadd.f32 0.0, %v1394
    %v1396 = vpop.f32.mrb[0].mxu0
    %v1397 = vpop.f32.mrb[0].mxu0
    %v1398 = vadd.f32 0.0, %v1397
    %v1399 = vpop.f32.mrb[0].mxu0
    %1400 = vmatprep.mubr.bf16.mxu0 0
    %1401 = vmatmul.mubr.bf16.gmra.mrb[0].mxu0 %v1342
    %v1402 = vpop.f32.mrb[0].mxu0
    %v1403 = vadd.f32 0.0, %v1402
    %v1404 = vpop.f32.mrb[0].mxu0
    %v1405 = vpop.f32.mrb[0].mxu0
    %v1406 = vadd.f32 0.0, %v1405
    %v1407 = vpop.f32.mrb[0].mxu0
    %1408 = vdwg.mxu0
    %vm1409 = vcmask 195584
    %v1411 = vsel %vm1409, %v1079, 0
    %v1414 = vsel %vm1409, %v1080, 0
    %v1417 = vsel %vm1409, %v1081, 0
    %v1420 = vsel %vm1409, %v1082, 0
    %v1423 = vsel %vm1299, %v1311, 0
    %1425 = vmatprep.subr.bf16.mxu0 0
    %1426 = vmatpush1.bf16.msra.mxu0 %v1310
    %1427 = vmatprep.subr.bf16.mxu0 0
    %1428 = vmatpush1.bf16.msra.mxu0 %v1423
    %1429 = vmatprep.subr.bf16.mxu0 0
    %1430 = vmatpush1.bf16.msra.mxu0 0
    %1431 = vmatprep.subr.bf16.mxu0 0
    %1432 = vmatpush1.bf16.msra.mxu0 0
    %1433 = vmatprep.subr.bf16.mxu0 0
    %1434 = vmatpush1.bf16.msra.mxu0 0
    %1435 = vmatprep.subr.bf16.mxu0 0
    %1436 = vmatpush1.bf16.msra.mxu0 0
    %1437 = vmatprep.subr.bf16.mxu0 0
    %1438 = vmatpush1.bf16.msra.mxu0 0
    %1439 = vmatprep.subr.bf16.mxu0 0
    %1440 = vmatpush1.bf16.msra.mxu0 0
    %1441 = vmatprep.subr.bf16.mxu0 0
    %1442 = vmatpush1.bf16.msra.mxu0 0
    %1443 = vmatprep.subr.bf16.mxu0 0
    %1444 = vmatpush1.bf16.msra.mxu0 0
    %1445 = vmatprep.subr.bf16.mxu0 0
    %1446 = vmatpush1.bf16.msra.mxu0 0
    %1447 = vmatprep.subr.bf16.mxu0 0
    %1448 = vmatpush1.bf16.msra.mxu0 0
    %1449 = vmatprep.subr.bf16.mxu0 0
    %1450 = vmatpush1.bf16.msra.mxu0 0
    %1451 = vmatprep.subr.bf16.mxu0 0
    %1452 = vmatpush1.bf16.msra.mxu0 0
    %1453 = vmatprep.subr.bf16.mxu0 0
    %1454 = vmatpush1.bf16.msra.mxu0 0
    %1455 = vmatprep.subr.bf16.mxu0 0
    %1456 = vmatpush1.bf16.msra.mxu0 0
    %1457 = vmatprep.mubr.bf16.mxu0 0
    %1458 = vmatmul.mubr.bf16.gmra.mrb[0].mxu0 %v1411
    %v1459 = vpop.f32.mrb[0].mxu0
    %v1460 = vadd.f32 %v1379, %v1459
    %v1461 = vpop.f32.mrb[0].mxu0
    %v1462 = vpop.f32.mrb[0].mxu0
    %v1463 = vadd.f32 %v1382, %v1462
    %v1464 = vpop.f32.mrb[0].mxu0
    %1465 = vmatprep.mubr.bf16.mxu0 0
    %1466 = vmatmul.mubr.bf16.gmra.mrb[0].mxu0 %v1414
    %v1467 = vpop.f32.mrb[0].mxu0
    %v1468 = vadd.f32 %v1387, %v1467
    %v1469 = vpop.f32.mrb[0].mxu0
    %v1470 = vpop.f32.mrb[0].mxu0
    %v1471 = vadd.f32 %v1390, %v1470
    %v1472 = vpop.f32.mrb[0].mxu0
    %1473 = vmatprep.mubr.bf16.mxu0 0
    %1474 = vmatmul.mubr.bf16.gmra.mrb[0].mxu0 %v1417
    %v1475 = vpop.f32.mrb[0].mxu0
    %v1476 = vadd.f32 %v1395, %v1475
    %v1477 = vpop.f32.mrb[0].mxu0
    %v1478 = vpop.f32.mrb[0].mxu0
    %v1479 = vadd.f32 %v1398, %v1478
    %v1480 = vpop.f32.mrb[0].mxu0
    %1481 = vmatprep.mubr.bf16.mxu0 0
    %1482 = vmatmul.mubr.bf16.gmra.mrb[0].mxu0 %v1420
    %v1483 = vpop.f32.mrb[0].mxu0
    %v1484 = vadd.f32 %v1403, %v1483
    %v1485 = vpop.f32.mrb[0].mxu0
    %v1486 = vpop.f32.mrb[0].mxu0
    %v1487 = vadd.f32 %v1406, %v1486
    %v1488 = vpop.f32.mrb[0].mxu0
    %1489 = vdwg.mxu0
    %v1490 = vld [vmem:[%s16] sm:$0x1]
    %v1492 = vlaneseq
    %v1493 = vshrl.u32 %v1492, 7
    %v1494 = vsub.s32 0, %v1493
    %v1495 = vrot.slane %v1490, %v1494
    %v1497 = vadd.f32 %v1460, %v1495
    %v1498 = vadd.f32 %v1463, %v1495
    %v1499 = vadd.f32 %v1468, %v1495
    %v1500 = vadd.f32 %v1471, %v1495
    %v1501 = vadd.f32 %v1476, %v1495
    %v1502 = vadd.f32 %v1479, %v1495
    %v1503 = vadd.f32 %v1484, %v1495
    %v1504 = vadd.f32 %v1487, %v1495
    %v1505 = vsub.f32 0.0, %v1497
    %v1506 = vsub.f32 0.0, %v1498
    %v1507 = vsub.f32 0.0, %v1499
    %v1508 = vsub.f32 0.0, %v1500
    %v1509 = vsub.f32 0.0, %v1501
    %v1510 = vsub.f32 0.0, %v1502
    %v1511 = vsub.f32 0.0, %v1503
    %v1512 = vsub.f32 0.0, %v1504
    %v1513 = vmul.f32 %v1505, 1.442695
    %v1514 = vpow.pop %v1513
    %v1515 = vmul.f32 %v1506, 1.442695
    %v1516 = vpow.pop %v1515
    %v1517 = vmul.f32 %v1507, 1.442695
    %v1518 = vpow.pop %v1517
    %v1519 = vmul.f32 %v1508, 1.442695
    %v1520 = vpow.pop %v1519
    %v1521 = vmul.f32 %v1509, 1.442695
    %v1522 = vpow.pop %v1521
    %v1523 = vmul.f32 %v1510, 1.442695
    %v1524 = vpow.pop %v1523
    %v1525 = vmul.f32 %v1511, 1.442695
    %v1526 = vpow.pop %v1525
    %v1527 = vmul.f32 %v1512, 1.442695
    %v1528 = vpow.pop %v1527
    %v1529 = vadd.f32 %v1514, 1.0
    %v1530 = vadd.f32 %v1516, 1.0
    %v1531 = vadd.f32 %v1518, 1.0
    %v1532 = vadd.f32 %v1520, 1.0
    %v1533 = vadd.f32 %v1522, 1.0
    %v1534 = vadd.f32 %v1524, 1.0
    %v1535 = vadd.f32 %v1526, 1.0
    %v1536 = vadd.f32 %v1528, 1.0
    %v1537 = vrcp.pop %v1529
    %v1538 = vrcp.pop %v1530
    %v1539 = vrcp.pop %v1531
    %v1540 = vrcp.pop %v1532
    %v1541 = vrcp.pop %v1533
    %v1542 = vrcp.pop %v1534
    %v1543 = vrcp.pop %v1535
    %v1544 = vrcp.pop %v1536
    %v1545 = vmul.f32 %v1497, %v1537
    %v1546 = vmul.f32 %v1498, %v1538
    %v1547 = vmul.f32 %v1499, %v1539
    %v1548 = vmul.f32 %v1500, %v1540
    %v1549 = vmul.f32 %v1501, %v1541
    %v1550 = vmul.f32 %v1502, %v1542
    %v1551 = vmul.f32 %v1503, %v1543
    %v1552 = vmul.f32 %v1504, %v1544
    %1553 = vst.msk [vmem:[%s17] sm:$0xff] %vm1110, %v1545
    %1554 = vst.msk [vmem:[%s17 + $0x8] sm:$0xff] %vm1110, %v1546
    %1555 = vst.msk [vmem:[%s17 + $0x10] sm:$0xff] %vm1110, %v1547
    %1556 = vst.msk [vmem:[%s17 + $0x18] sm:$0xff] %vm1110, %v1548
    %1557 = vst.msk [vmem:[%s17 + $0x20] sm:$0xff] %vm1110, %v1549
    %1558 = vst.msk [vmem:[%s17 + $0x28] sm:$0xff] %vm1110, %v1550
    %1559 = vst.msk [vmem:[%s17 + $0x30] sm:$0xff] %vm1110, %v1551
    %1560 = vst.msk [vmem:[%s17 + $0x38] sm:$0xff] %vm1110, %v1552
    // Predicated region
    $region70: #{graph_rbf_block.1} parent=1 // pred_check
      _
    $region71: #{graph_rbf_block.1} parent=1 // pred_check_branch
      %1562 = sbr.rel (0) target = $region73
    $region72: #{graph_rbf_block.1} parent=1 // pred_region
      _
    $region73: #{graph_rbf_block.1} parent=1 // pred_fallthru
      _
    // Predicated region
    $region74: #{graph_rbf_block.1} parent=1 // pred_check
      _
    $region75: #{graph_rbf_block.1} parent=1 // pred_check_branch
      %1564 = sbr.rel (0) target = $region77
    $region76: #{graph_rbf_block.1} parent=1 // pred_region
      %s1566 = ssub.s32 256, 256
      %1567 = vsyncadd [#allocation3], %s1566
      %s1568 = sshll.u32 [#allocation2], 4
      %s1569 = int_to_ptr.vmem [resolvable:$true] %s1568
      %1574 = dma.vmem_to_hbm [thread:$0]  %s1569, 256, %s18, [#allocation3], 128, 128, 8
    $region77: #{graph_rbf_block.1} parent=1 // pred_fallthru
      _
    // Predicated region
    $region78: #{graph_rbf_block.1} parent=1 // pred_check
      _
    $region79: #{graph_rbf_block.1} parent=1 // pred_check_branch
      %1576 = sbr.rel (0) target = $region81
    $region80: #{graph_rbf_block.1} parent=1 // pred_region
      _
    $region81: #{graph_rbf_block.1} parent=1 // pred_fallthru
      _
    // Predicated region
    $region82: #{graph_rbf_block.1} parent=1 // pred_check
      _
    $region83: #{graph_rbf_block.1} parent=1 // pred_check_branch
      %1578 = sbr.rel (0) target = $region85
    $region84: #{graph_rbf_block.1} parent=1 // pred_region
      %1579 = dma.done [#allocation3], 256
    $region85: #{graph_rbf_block.1} parent=1 // pred_fallthru
      _
    %1580 = vsyncpa [#allocation3], 1

</llo_original>
